<compile_context>
chip_gen: v7x
topology: tpu7x:2x2x1
jax: 0.10.0
libtpu: 0.0.40
codegen_flags: <defaults>
</compile_context>

<pallas_src>
import jax
import jax.numpy as jnp
from jax import lax
from jax.experimental import pallas as pl
from jax.experimental.pallas import tpu as pltpu


# -------------------- helpers --------------------

def _silu(y):
    # exp runs on the EUP; kernels here are HBM-bound so the divide is hidden.
    return y * (1.0 / (1.0 + jnp.exp(-y)))


def _pick_tile_m(M, target):
    """Largest multiple of 8 <= target that divides M (whole M if tiny/odd)."""
    if M <= target or M % 8 != 0:
        return M
    t = (target // 8) * 8
    while M % t:
        t -= 8
    return t


_COMPILER_PARAMS = pltpu.CompilerParams(
    dimension_semantics=("parallel",),
    vmem_limit_bytes=32 * 1024 * 1024,
)


# -------------------- fused conv1 + conv2 (two 1x1 convs, one pass over x) ----

def _conv12_kernel(x_ref, w1_ref, b1_ref, w2_ref, b2_ref, o1_ref, o2_ref):
    # x_ref: (TM, Cin)   w1: (Cin, C1)  w2: (Cin, C2)   o1: (TM, C1)  o2: (TM, C2)
    x = x_ref[...]
    y1 = jnp.dot(x, w1_ref[...], preferred_element_type=jnp.float32) + b1_ref[...]
    o1_ref[...] = _silu(y1).astype(o1_ref.dtype)
    y2 = jnp.dot(x, w2_ref[...], preferred_element_type=jnp.float32) + b2_ref[...]
    o2_ref[...] = _silu(y2).astype(o2_ref.dtype)


def conv1_conv2_fused(x, w1, b1, w2, b2, tile_m=512):
    """Both leading 1x1 convs (+bias+SiLU) from a single HBM read of x (NHWC)."""
    N, H, W, Cin = x.shape
    C1, C2 = w1.shape[1], w2.shape[1]
    M = N * H * W
    tm = _pick_tile_m(M, tile_m)
    xf = x.reshape(M, Cin)
    o1, o2 = pl.pallas_call(
        _conv12_kernel,
        out_shape=(jax.ShapeDtypeStruct((M, C1), x.dtype),
                   jax.ShapeDtypeStruct((M, C2), x.dtype)),
        grid=(M // tm,),
        in_specs=[
            pl.BlockSpec((tm, Cin), lambda i: (i, 0)),
            pl.BlockSpec((Cin, C1), lambda i: (0, 0)),
            pl.BlockSpec((1, C1), lambda i: (0, 0)),
            pl.BlockSpec((Cin, C2), lambda i: (0, 0)),
            pl.BlockSpec((1, C2), lambda i: (0, 0)),
        ],
        out_specs=(pl.BlockSpec((tm, C1), lambda i: (i, 0)),
                   pl.BlockSpec((tm, C2), lambda i: (i, 0))),
        compiler_params=_COMPILER_PARAMS,
    )(xf, w1, b1.reshape(1, C1), w2, b2.reshape(1, C2))
    return o1.reshape(N, H, W, C1), o2.reshape(N, H, W, C2)


# -------------------- fused Bottleneck: 1x1+SiLU -> 3x3+SiLU -> (+residual) ---

def _make_bottleneck_kernel(shortcut):
    def kernel(y_ref, c1w_ref, c1b_ref, c2w_ref, c2b_ref, o_ref, hp_ref):
        # y_ref/o_ref: (1, H, W, Ch)  c1w: (Ch, Ch)  c2w: (9*Ch, Ch)
        # hp_ref: VMEM scratch (H+2, W+2, Ch) - in-VMEM zero padding (no HBM pad).
        _, H, W, Ch = o_ref.shape
        yf = y_ref[0].reshape(H * W, Ch).astype(jnp.float32)

        # c1: 1x1 conv + SiLU (fused, so the hidden activation never hits HBM)
        h = jnp.dot(yf, c1w_ref[...], preferred_element_type=jnp.float32)
        h = _silu(h + c1b_ref[...])

        # zero-pad into VMEM scratch
        hp_ref[...] = jnp.zeros(hp_ref.shape, jnp.float32)
        hp_ref[1:H + 1, 1:W + 1, :] = h.reshape(H, W, Ch)

        # 3x3 conv as ONE matmul with K = 9*Ch (tap-concatenated patch)
        taps = [hp_ref[ky:ky + H, kx:kx + W, :].reshape(H * W, Ch)
                for ky in range(3) for kx in range(3)]
        patch = jnp.concatenate(taps, axis=-1)                 # (H*W, 9*Ch)
        z = jnp.dot(patch, c2w_ref[...], preferred_element_type=jnp.float32)
        z = _silu(z + c2b_ref[...])

        if shortcut:                 # residual reuses the already-loaded input
            z = z + yf
        o_ref[0] = z.reshape(H, W, Ch).astype(o_ref.dtype)
    return kernel


def bottleneck_fused(y, c1_w, c1_b, c2_w, c2_b, shortcut=True):
    """One Bottleneck block (1x1 conv+SiLU, 3x3 conv pad=1 +SiLU, +residual)."""
    N, H, W, Ch = y.shape
    w2f = c2_w.reshape(9 * Ch, Ch)          # (ky,kx,cin,cout) -> (9*cin, cout)
    # TODO(synk): for production feature maps, add a spatial grid axis with a
    # 1-row halo (manual DMA) so the per-block footprint fits v7x's 64 MiB VMEM.
    return pl.pallas_call(
        _make_bottleneck_kernel(bool(shortcut)),
        out_shape=jax.ShapeDtypeStruct((N, H, W, Ch), y.dtype),
        grid=(N,),
        in_specs=[
            pl.BlockSpec((1, H, W, Ch), lambda n: (n, 0, 0, 0)),
            pl.BlockSpec((Ch, Ch), lambda n: (0, 0)),
            pl.BlockSpec((1, Ch), lambda n: (0, 0)),
            pl.BlockSpec((9 * Ch, Ch), lambda n: (0, 0)),
            pl.BlockSpec((1, Ch), lambda n: (0, 0)),
        ],
        out_specs=pl.BlockSpec((1, H, W, Ch), lambda n: (n, 0, 0, 0)),
        scratch_shapes=[pltpu.VMEM((H + 2, W + 2, Ch), jnp.float32)],
        compiler_params=_COMPILER_PARAMS,
    )(y, c1_w, c1_b.reshape(1, Ch), w2f, c2_b.reshape(1, Ch))


# -------------------- concat-free conv3 (final 1x1) --------------------------

def _conv3_kernel(y_ref, x2_ref, wa_ref, wb_ref, b_ref, o_ref):
    # cat([y, x2], channel) @ W  ==  y @ W[:C1] + x2 @ W[C1:]  (no HBM concat)
    acc = jnp.dot(y_ref[...], wa_ref[...], preferred_element_type=jnp.float32)
    acc = acc + jnp.dot(x2_ref[...], wb_ref[...], preferred_element_type=jnp.float32)
    acc = acc + b_ref[...]
    o_ref[...] = _silu(acc).astype(o_ref.dtype)


def conv3_fused(y, x2, wa, wb, b, tile_m=512):
    N, H, W, C1 = y.shape
    C2 = x2.shape[3]
    Cout = wa.shape[1]
    M = N * H * W
    tm = _pick_tile_m(M, tile_m)
    yf, x2f = y.reshape(M, C1), x2.reshape(M, C2)
    out = pl.pallas_call(
        _conv3_kernel,
        out_shape=jax.ShapeDtypeStruct((M, Cout), y.dtype),
        grid=(M // tm,),
        in_specs=[
            pl.BlockSpec((tm, C1), lambda i: (i, 0)),
            pl.BlockSpec((tm, C2), lambda i: (i, 0)),
            pl.BlockSpec((C1, Cout), lambda i: (0, 0)),
            pl.BlockSpec((C2, Cout), lambda i: (0, 0)),
            pl.BlockSpec((1, Cout), lambda i: (0, 0)),
        ],
        out_specs=pl.BlockSpec((tm, Cout), lambda i: (i, 0)),
        compiler_params=_COMPILER_PARAMS,
    )(yf, x2f, wa, wb, b.reshape(1, Cout))
    return out.reshape(N, H, W, Cout)


# -------------------- parameter init (deterministic, synthetic) --------------

def init_csp_params(key, in_channels, out_channels, n=1, expansion=0.5):
    hidden = int(out_channels * expansion)
    c2_out = in_channels - hidden                      # per CSPLayerCustom spec

    def init(k, shape, fan_in):
        return jax.random.normal(k, shape, jnp.float32) / jnp.sqrt(float(fan_in))

    keys = iter(jax.random.split(key, 6 + 4 * n))
    params = {
        "conv1_w": init(next(keys), (in_channels, hidden), in_channels),
        "conv1_b": init(next(keys), (hidden,), in_channels),
        "conv2_w": init(next(keys), (in_channels, c2_out), in_channels),
        "conv2_b": init(next(keys), (c2_out,), in_channels),
        "conv3_w": init(next(keys), (in_channels, out_channels), in_channels),
        "conv3_b": init(next(keys), (out_channels,), in_channels),
        "bottlenecks": [],
    }
    for _ in range(n):
        params["bottlenecks"].append({
            "c1_w": init(next(keys), (hidden, hidden), hidden),
            "c1_b": init(next(keys), (hidden,), hidden),
            "c2_w": init(next(keys), (3, 3, hidden, hidden), 9 * hidden),
            "c2_b": init(next(keys), (hidden,), 9 * hidden),
        })
    return params


# -------------------- CSPLayer forward (Pallas) --------------------

def csp_layer_forward(x_nchw, params, shortcut=True, tile_m=512):
    # TODO(synk): optional bf16 activation/weight storage for v6e/v7x (kept f32
    # here so the numerical check against the f32 reference stays tight).
    x = jnp.transpose(x_nchw, (0, 2, 3, 1)).astype(jnp.float32)   # NCHW -> NHWC
    x0, x2 = conv1_conv2_fused(x, params["conv1_w"], params["conv1_b"],
                               params["conv2_w"], params["conv2_b"], tile_m)
    y = x0
    for blk in params["bottlenecks"]:
        # Bottleneck in==out channels, so use_add == shortcut
        y = bottleneck_fused(y, blk["c1_w"], blk["c1_b"],
                             blk["c2_w"], blk["c2_b"], shortcut)
    hidden = params["conv1_w"].shape[1]
    w3a = params["conv3_w"][:hidden]          # rows acting on the y branch
    w3b = params["conv3_w"][hidden:]          # rows acting on the x2 branch
    out = conv3_fused(y, x2, w3a, w3b, params["conv3_b"], tile_m)
    return jnp.transpose(out, (0, 3, 1, 2))   # NHWC -> NCHW


# -------------------- pure-JAX reference (for verification) ------------------

def _ref_conv(x, w_oihw, b, pad):
    y = lax.conv_general_dilated(
        x, w_oihw, (1, 1), ((pad, pad), (pad, pad)),
        dimension_numbers=("NCHW", "OIHW", "NCHW"),
        precision=lax.Precision.HIGHEST)
    return y + b[None, :, None, None]


def csp_layer_ref(x, params, shortcut=True):
    def c1x1(x, w, b):   # w: (Cin, Cout)
        return _silu(_ref_conv(x, jnp.transpose(w, (1, 0))[:, :, None, None], b, 0))

    def c3x3(x, w, b):   # w: (3, 3, Cin, Cout)
        return _silu(_ref_conv(x, jnp.transpose(w, (3, 2, 0, 1)), b, 1))

    x0 = c1x1(x, params["conv1_w"], params["conv1_b"])
    x2 = c1x1(x, params["conv2_w"], params["conv2_b"])
    y = x0
    for blk in params["bottlenecks"]:
        h = c1x1(y, blk["c1_w"], blk["c1_b"])
        z = c3x3(h, blk["c2_w"], blk["c2_b"])
        y = z + y if shortcut else z
    xc = jnp.concatenate([y, x2], axis=1)
    return c1x1(xc, params["conv3_w"], params["conv3_b"])


# -------------------- main --------------------

if __name__ == "__main__":
    key = jax.random.PRNGKey(0)
    kx, kp = jax.random.split(key)

    in_channels, out_channels, n = 4, 4, 2
    x = jax.random.normal(kx, (2, in_channels, 16, 16), jnp.float32)   # NCHW
    params = init_csp_params(kp, in_channels, out_channels, n=n)

    # tile_m=256 so the toy M=2*16*16=512 exercises the multi-block pipelined path.
    out = jax.block_until_ready(csp_layer_forward(x, params, shortcut=True, tile_m=256))
    assert out.shape == (2, out_channels, 16, 16), out.shape

    ref = jax.block_until_ready(csp_layer_ref(x, params, shortcut=True))
    max_err = float(jnp.max(jnp.abs(out - ref)))
    assert jnp.allclose(out, ref, rtol=1e-4, atol=1e-4), f"max_err={max_err}"

    print("KERNEL_OK")
</pallas_src>

<mosaic_0001>
module attributes {stable_mosaic.version = 11 : i64} {
  func.func @_conv12_kernel(%arg0: i32, %arg1: memref<256x4xf32, #tpu.memory_space<vmem>>, %arg2: memref<4x2xf32, #tpu.memory_space<vmem>>, %arg3: memref<1x2xf32, #tpu.memory_space<vmem>>, %arg4: memref<4x2xf32, #tpu.memory_space<vmem>>, %arg5: memref<1x2xf32, #tpu.memory_space<vmem>>, %arg6: memref<256x2xf32, #tpu.memory_space<vmem>>, %arg7: memref<256x2xf32, #tpu.memory_space<vmem>>) attributes {dimension_semantics = [#tpu.dimension_semantics<parallel>], iteration_bounds = array<i64: 2>, scalar_prefetch = 0 : i64, scratch_operands = 0 : i64, tpu.core_type = #tpu.core_type<tc>, window_params = [{transform_indices = @transform_0, window_bounds = array<i64: 256, 4>}, {pipeline_mode = #tpu.pipeline_mode<synchronous>, transform_indices = @transform_1, window_bounds = array<i64: 4, 2>}, {pipeline_mode = #tpu.pipeline_mode<synchronous>, transform_indices = @transform_2, window_bounds = array<i64: 1, 2>}, {pipeline_mode = #tpu.pipeline_mode<synchronous>, transform_indices = @transform_3, window_bounds = array<i64: 4, 2>}, {pipeline_mode = #tpu.pipeline_mode<synchronous>, transform_indices = @transform_4, window_bounds = array<i64: 1, 2>}, {transform_indices = @transform_5, window_bounds = array<i64: 256, 2>}, {transform_indices = @transform_6, window_bounds = array<i64: 256, 2>}]} {
    %c0 = arith.constant 0 : index
    %c0_0 = arith.constant 0 : index
    %0 = vector.load %arg1[%c0, %c0_0] : memref<256x4xf32, #tpu.memory_space<vmem>>, vector<256x4xf32>
    %c0_1 = arith.constant 0 : index
    %c0_2 = arith.constant 0 : index
    %1 = vector.load %arg2[%c0_1, %c0_2] : memref<4x2xf32, #tpu.memory_space<vmem>>, vector<4x2xf32>
    %cst = arith.constant dense<0.000000e+00> : vector<256x2xf32>
    %2 = tpu.matmul %0, %1, %cst {dimension_numbers = #tpu.dot_dimension_numbers<[1], [0], [0], [1], [0, 0, 1, 1], [], []>} : vector<256x4xf32>, vector<4x2xf32>, vector<256x2xf32> -> vector<256x2xf32>
    %c0_3 = arith.constant 0 : index
    %c0_4 = arith.constant 0 : index
    %3 = vector.load %arg3[%c0_3, %c0_4] : memref<1x2xf32, #tpu.memory_space<vmem>>, vector<1x2xf32>
    %4 = vector.broadcast %3 : vector<1x2xf32> to vector<256x2xf32>
    %5 = arith.addf %2, %4 : vector<256x2xf32>
    %cst_5 = arith.constant 0.000000e+00 : f32
    %6 = vector.broadcast %cst_5 : f32 to vector<256x2xf32>
    %7 = arith.subf %6, %5 : vector<256x2xf32>
    %8 = math.exp %7 : vector<256x2xf32>
    %cst_6 = arith.constant 1.000000e+00 : f32
    %9 = vector.broadcast %cst_6 : f32 to vector<256x2xf32>
    %10 = arith.addf %9, %8 : vector<256x2xf32>
    %cst_7 = arith.constant 1.000000e+00 : f32
    %11 = vector.broadcast %cst_7 : f32 to vector<256x2xf32>
    %12 = arith.divf %11, %10 : vector<256x2xf32>
    %13 = arith.mulf %5, %12 : vector<256x2xf32>
    %c0_8 = arith.constant 0 : index
    %c0_9 = arith.constant 0 : index
    %14 = vector.load %arg6[%c0_8, %c0_9] : memref<256x2xf32, #tpu.memory_space<vmem>>, vector<256x2xf32>
    tpu.vector_store %arg6[%c0_8, %c0_9], %13 {strides = array<i32>} : memref<256x2xf32, #tpu.memory_space<vmem>>, vector<256x2xf32>,
    %c0_10 = arith.constant 0 : index
    %c0_11 = arith.constant 0 : index
    %15 = vector.load %arg4[%c0_10, %c0_11] : memref<4x2xf32, #tpu.memory_space<vmem>>, vector<4x2xf32>
    %cst_12 = arith.constant dense<0.000000e+00> : vector<256x2xf32>
    %16 = tpu.matmul %0, %15, %cst_12 {dimension_numbers = #tpu.dot_dimension_numbers<[1], [0], [0], [1], [0, 0, 1, 1], [], []>} : vector<256x4xf32>, vector<4x2xf32>, vector<256x2xf32> -> vector<256x2xf32>
    %c0_13 = arith.constant 0 : index
    %c0_14 = arith.constant 0 : index
    %17 = vector.load %arg5[%c0_13, %c0_14] : memref<1x2xf32, #tpu.memory_space<vmem>>, vector<1x2xf32>
    %18 = vector.broadcast %17 : vector<1x2xf32> to vector<256x2xf32>
    %19 = arith.addf %16, %18 : vector<256x2xf32>
    %cst_15 = arith.constant 0.000000e+00 : f32
    %20 = vector.broadcast %cst_15 : f32 to vector<256x2xf32>
    %21 = arith.subf %20, %19 : vector<256x2xf32>
    %22 = math.exp %21 : vector<256x2xf32>
    %cst_16 = arith.constant 1.000000e+00 : f32
    %23 = vector.broadcast %cst_16 : f32 to vector<256x2xf32>
    %24 = arith.addf %23, %22 : vector<256x2xf32>
    %cst_17 = arith.constant 1.000000e+00 : f32
    %25 = vector.broadcast %cst_17 : f32 to vector<256x2xf32>
    %26 = arith.divf %25, %24 : vector<256x2xf32>
    %27 = arith.mulf %19, %26 : vector<256x2xf32>
    %c0_18 = arith.constant 0 : index
    %c0_19 = arith.constant 0 : index
    %28 = vector.load %arg7[%c0_18, %c0_19] : memref<256x2xf32, #tpu.memory_space<vmem>>, vector<256x2xf32>
    tpu.vector_store %arg7[%c0_18, %c0_19], %27 {strides = array<i32>} : memref<256x2xf32, #tpu.memory_space<vmem>>, vector<256x2xf32>,
    return
  }
  func.func @transform_0(%arg0: i32) -> (i32, i32) {
    %c0_i32 = arith.constant 0 : i32
    %c0_i32_0 = arith.constant 0 : i32
    return %arg0, %c0_i32 : i32, i32
  }
  func.func @transform_1(%arg0: i32) -> (i32, i32) {
    %c0_i32 = arith.constant 0 : i32
    %c0_i32_0 = arith.constant 0 : i32
    %c0_i32_1 = arith.constant 0 : i32
    return %c0_i32, %c0_i32_0 : i32, i32
  }
  func.func @transform_2(%arg0: i32) -> (i32, i32) {
    %c0_i32 = arith.constant 0 : i32
    %c0_i32_0 = arith.constant 0 : i32
    %c0_i32_1 = arith.constant 0 : i32
    return %c0_i32, %c0_i32_0 : i32, i32
  }
  func.func @transform_3(%arg0: i32) -> (i32, i32) {
    %c0_i32 = arith.constant 0 : i32
    %c0_i32_0 = arith.constant 0 : i32
    %c0_i32_1 = arith.constant 0 : i32
    return %c0_i32, %c0_i32_0 : i32, i32
  }
  func.func @transform_4(%arg0: i32) -> (i32, i32) {
    %c0_i32 = arith.constant 0 : i32
    %c0_i32_0 = arith.constant 0 : i32
    %c0_i32_1 = arith.constant 0 : i32
    return %c0_i32, %c0_i32_0 : i32, i32
  }
  func.func @transform_5(%arg0: i32) -> (i32, i32) {
    %c0_i32 = arith.constant 0 : i32
    %c0_i32_0 = arith.constant 0 : i32
    return %arg0, %c0_i32 : i32, i32
  }
  func.func @transform_6(%arg0: i32) -> (i32, i32) {
    %c0_i32 = arith.constant 0 : i32
    %c0_i32_0 = arith.constant 0 : i32
    return %arg0, %c0_i32 : i32, i32
  }
}

</mosaic_0001>

<llo_original>
// kernel: tpu_custom_call.1
$region0: #{tpu_custom_call.1}
  #allocation0 [shape = 'u32[]', space=smem, size = 0x4, offset = 0x4, fixed_abs, tag = 'smem constant byte address 0x4 - core index']
  #allocation1 [shape = 'u32[144,128]{1,0:T(1,128)}', space=vmem, size = 0x12000, scoped, tag = 'internal scratch']
  %s0 = inlined_call_operand.vmem [shape: f32[512,4], index: 0, kind: input, shape index: {}]
  %s1 = inlined_call_operand.vmem [shape: f32[4,2], index: 1, kind: input, shape index: {}]
  %s2 = inlined_call_operand.vmem [shape: f32[1,2], index: 2, kind: input, shape index: {}]
  %s3 = inlined_call_operand.vmem [shape: f32[4,2], index: 3, kind: input, shape index: {}]
  %s4 = inlined_call_operand.vmem [shape: f32[1,2], index: 4, kind: input, shape index: {}]
  %s5 = inlined_call_operand.vmem [shape: f32[512,2], index: 5, kind: output, shape index: {0}]
  %s6 = inlined_call_operand.vmem [shape: f32[512,2], index: 6, kind: output, shape index: {1}]
  %7 = xla_tuple %s5, %s6
  %s8 = sld [smem:[#allocation0]]
  $region61: #{tpu_custom_call.1} parent=0
    _
  %s10 = ssub.s32 1, %s8
  %s11 = scalar_select 0, %s10, %s8
  loop: start=0, step=1, limit=4
  $region2: #{tpu_custom_call.1} parent=0 // loop_pre_header
    _
  $region3: #{tpu_custom_call.1} parent=0 // loop_header
    %s13 = sphi 0, %s17
    %p14 = scmp.ge.s32.totalorder %s13, 4
    %s23 = sphi 0, %s25
    %s26 = sphi 0, %s23
    %s27 = sphi 0, %s26
    %s43 = sphi 0, %s27
    %s47 = sphi 0, %s47
    %s49 = sphi 0, %s47
    %s50 = sphi 0, %s49
    %s64 = sphi 0, %s50
    %s68 = sphi 0, %s68
    %s70 = sphi 0, %s68
    %s71 = sphi 0, %s70
    %s85 = sphi 0, %s71
    %s89 = sphi 0, %s89
    %s91 = sphi 0, %s89
    %s92 = sphi 0, %s91
    %s106 = sphi 0, %s92
    %s110 = sphi 0, %s110
    %s112 = sphi 0, %s110
    %s113 = sphi 0, %s112
    %s127 = sphi 0, %s113
    %s133 = sphi 0, %s135
    %s136 = sphi 0, %s133
    %s137 = sphi 0, %s136
    %s153 = sphi 0, %s137
    %s159 = sphi 0, %s161
    %s162 = sphi 0, %s159
    %s163 = sphi 0, %s162
    %s179 = sphi 0, %s163
  $region4: #{tpu_custom_call.1} parent=0 // loop_header_branch
    %16 = sbr.rel (%p14) target = $region8
  $region5: #{tpu_custom_call.1} parent=0 // loop_body
    %s18 = ssub.s32 %s13, 1
    %s19 = ssub.s32 %s13, 2
    %s20 = sadd.s32 %s13, 1
    %s21 = ssub.s32 %s13, %s20
    %p22 = scmp.eq.s32.totalorder %s21, 0
    %s24 = sadd.s32 %s23, 1
    %s25 = scalar_select %p22, %s23, %s24
    %p28 = pneg %p22
    %p29 = scmp.eq.s32.totalorder %s13, 1
    %p30 = por %p28, %p29
    %p31 = scmp.ne.s32.totalorder %s23, %s26
    %p32 = scmp.eq.s32.totalorder %s13, 0
    %p33 = por %p31, %p32
    %p34 = scmp.ne.s32.totalorder %s23, %s26
    %p35 = scmp.eq.s32.totalorder %s18, 1
    %p36 = por %p34, %p35
    %p37 = scmp.ne.s32.totalorder %s26, %s27
    %p38 = scmp.eq.s32.totalorder %s18, 0
    %p39 = por %p37, %p38
    %p40 = scmp.ne.s32.totalorder %s26, %s27
    %p41 = scmp.eq.s32.totalorder %s19, 1
    %p42 = por %p40, %p41
    %p44 = scmp.ne.s32.totalorder %s27, %s43
    %p45 = scmp.eq.s32.totalorder %s19, 0
    %p46 = por %p44, %p45
    %s48 = sadd.s32 %s47, 1
    %p51 = scmp.eq.s32.totalorder %s13, 1
    %p52 = scmp.ne.s32.totalorder %s47, %s49
    %p53 = scmp.eq.s32.totalorder %s13, 0
    %p54 = por %p52, %p53
    %p55 = scmp.ne.s32.totalorder %s47, %s49
    %p56 = scmp.eq.s32.totalorder %s18, 1
    %p57 = por %p55, %p56
    %p58 = scmp.ne.s32.totalorder %s49, %s50
    %p59 = scmp.eq.s32.totalorder %s18, 0
    %p60 = por %p58, %p59
    %p61 = scmp.ne.s32.totalorder %s49, %s50
    %p62 = scmp.eq.s32.totalorder %s19, 1
    %p63 = por %p61, %p62
    %p65 = scmp.ne.s32.totalorder %s50, %s64
    %p66 = scmp.eq.s32.totalorder %s19, 0
    %p67 = por %p65, %p66
    %s69 = sadd.s32 %s68, 1
    %p72 = scmp.eq.s32.totalorder %s13, 1
    %p73 = scmp.ne.s32.totalorder %s68, %s70
    %p74 = scmp.eq.s32.totalorder %s13, 0
    %p75 = por %p73, %p74
    %p76 = scmp.ne.s32.totalorder %s68, %s70
    %p77 = scmp.eq.s32.totalorder %s18, 1
    %p78 = por %p76, %p77
    %p79 = scmp.ne.s32.totalorder %s70, %s71
    %p80 = scmp.eq.s32.totalorder %s18, 0
    %p81 = por %p79, %p80
    %p82 = scmp.ne.s32.totalorder %s70, %s71
    %p83 = scmp.eq.s32.totalorder %s19, 1
    %p84 = por %p82, %p83
    %p86 = scmp.ne.s32.totalorder %s71, %s85
    %p87 = scmp.eq.s32.totalorder %s19, 0
    %p88 = por %p86, %p87
    %s90 = sadd.s32 %s89, 1
    %p93 = scmp.eq.s32.totalorder %s13, 1
    %p94 = scmp.ne.s32.totalorder %s89, %s91
    %p95 = scmp.eq.s32.totalorder %s13, 0
    %p96 = por %p94, %p95
    %p97 = scmp.ne.s32.totalorder %s89, %s91
    %p98 = scmp.eq.s32.totalorder %s18, 1
    %p99 = por %p97, %p98
    %p100 = scmp.ne.s32.totalorder %s91, %s92
    %p101 = scmp.eq.s32.totalorder %s18, 0
    %p102 = por %p100, %p101
    %p103 = scmp.ne.s32.totalorder %s91, %s92
    %p104 = scmp.eq.s32.totalorder %s19, 1
    %p105 = por %p103, %p104
    %p107 = scmp.ne.s32.totalorder %s92, %s106
    %p108 = scmp.eq.s32.totalorder %s19, 0
    %p109 = por %p107, %p108
    %s111 = sadd.s32 %s110, 1
    %p114 = scmp.eq.s32.totalorder %s13, 1
    %p115 = scmp.ne.s32.totalorder %s110, %s112
    %p116 = scmp.eq.s32.totalorder %s13, 0
    %p117 = por %p115, %p116
    %p118 = scmp.ne.s32.totalorder %s110, %s112
    %p119 = scmp.eq.s32.totalorder %s18, 1
    %p120 = por %p118, %p119
    %p121 = scmp.ne.s32.totalorder %s112, %s113
    %p122 = scmp.eq.s32.totalorder %s18, 0
    %p123 = por %p121, %p122
    %p124 = scmp.ne.s32.totalorder %s112, %s113
    %p125 = scmp.eq.s32.totalorder %s19, 1
    %p126 = por %p124, %p125
    %p128 = scmp.ne.s32.totalorder %s113, %s127
    %p129 = scmp.eq.s32.totalorder %s19, 0
    %p130 = por %p128, %p129
    %s131 = ssub.s32 %s13, %s20
    %p132 = scmp.eq.s32.totalorder %s131, 0
    %s134 = sadd.s32 %s133, 1
    %s135 = scalar_select %p132, %s133, %s134
    %p138 = pneg %p132
    %p139 = scmp.eq.s32.totalorder %s13, 1
    %p140 = por %p138, %p139
    %p141 = scmp.ne.s32.totalorder %s133, %s136
    %p142 = scmp.eq.s32.totalorder %s13, 0
    %p143 = por %p141, %p142
    %p144 = scmp.ne.s32.totalorder %s133, %s136
    %p145 = scmp.eq.s32.totalorder %s18, 1
    %p146 = por %p144, %p145
    %p147 = scmp.ne.s32.totalorder %s136, %s137
    %p148 = scmp.eq.s32.totalorder %s18, 0
    %p149 = por %p147, %p148
    %p150 = scmp.ne.s32.totalorder %s136, %s137
    %p151 = scmp.eq.s32.totalorder %s19, 1
    %p152 = por %p150, %p151
    %p154 = scmp.ne.s32.totalorder %s137, %s153
    %p155 = scmp.eq.s32.totalorder %s19, 0
    %p156 = por %p154, %p155
    %s157 = ssub.s32 %s13, %s20
    %p158 = scmp.eq.s32.totalorder %s157, 0
    %s160 = sadd.s32 %s159, 1
    %s161 = scalar_select %p158, %s159, %s160
    %p164 = pneg %p158
    %p165 = scmp.eq.s32.totalorder %s13, 1
    %p166 = por %p164, %p165
    %p167 = scmp.ne.s32.totalorder %s159, %s162
    %p168 = scmp.eq.s32.totalorder %s13, 0
    %p169 = por %p167, %p168
    %p170 = scmp.ne.s32.totalorder %s159, %s162
    %p171 = scmp.eq.s32.totalorder %s18, 1
    %p172 = por %p170, %p171
    %p173 = scmp.ne.s32.totalorder %s162, %s163
    %p174 = scmp.eq.s32.totalorder %s18, 0
    %p175 = por %p173, %p174
    %p176 = scmp.ne.s32.totalorder %s162, %s163
    %p177 = scmp.eq.s32.totalorder %s19, 1
    %p178 = por %p176, %p177
    %p180 = scmp.ne.s32.totalorder %s163, %s179
    %p181 = scmp.eq.s32.totalorder %s19, 0
    %p182 = por %p180, %p181
    %p183 = scmp.le.s32.totalorder 1, %s13
    %p184 = scmp.lt.s32.totalorder %s13, 3
    %p185 = pnand %p183, %p184
    %p186 = pneg %p185
    // Predicated region
    $region9: #{tpu_custom_call.1} parent=5 // pred_check
      _
    $region10: #{tpu_custom_call.1} parent=5 // pred_check_branch
      %188 = sbr.rel (%p185) target = $region12
    $region11: #{tpu_custom_call.1} parent=5 // pred_region
      %s189 = ssub.s32 %s13, 1
      // Predicated region
      $region13: #{tpu_custom_call.1} parent=11 // pred_check
        %p190 = pneg %p60
      $region14: #{tpu_custom_call.1} parent=11 // pred_check_branch
        %192 = sbr.rel (%p190) target = $region16
      $region15: #{tpu_custom_call.1} parent=11 // pred_region
        _
      $region16: #{tpu_custom_call.1} parent=11 // pred_fallthru
        _
      // Predicated region
      $region17: #{tpu_custom_call.1} parent=11 // pred_check
        %p193 = pneg %p81
      $region18: #{tpu_custom_call.1} parent=11 // pred_check_branch
        %195 = sbr.rel (%p193) target = $region20
      $region19: #{tpu_custom_call.1} parent=11 // pred_region
        _
      $region20: #{tpu_custom_call.1} parent=11 // pred_fallthru
        _
      // Predicated region
      $region21: #{tpu_custom_call.1} parent=11 // pred_check
        %p196 = pneg %p102
      $region22: #{tpu_custom_call.1} parent=11 // pred_check_branch
        %198 = sbr.rel (%p196) target = $region24
      $region23: #{tpu_custom_call.1} parent=11 // pred_region
        _
      $region24: #{tpu_custom_call.1} parent=11 // pred_fallthru
        _
      // Predicated region
      $region25: #{tpu_custom_call.1} parent=11 // pred_check
        %p199 = pneg %p123
      $region26: #{tpu_custom_call.1} parent=11 // pred_check_branch
        %201 = sbr.rel (%p199) target = $region28
      $region27: #{tpu_custom_call.1} parent=11 // pred_region
        _
      $region28: #{tpu_custom_call.1} parent=11 // pred_fallthru
        _
    $region12: #{tpu_custom_call.1} parent=5 // pred_fallthru
      _
    %p202 = scmp.lt.s32.totalorder %s13, 2
    // Predicated region
    $region29: #{tpu_custom_call.1} parent=5 // pred_check
      %p203 = pneg %p202
    $region30: #{tpu_custom_call.1} parent=5 // pred_check_branch
      %205 = sbr.rel (%p203) target = $region32
    $region31: #{tpu_custom_call.1} parent=5 // pred_region
      // Predicated region
      $region33: #{tpu_custom_call.1} parent=31 // pred_check
        %p206 = pneg %p33
      $region34: #{tpu_custom_call.1} parent=31 // pred_check_branch
        %208 = sbr.rel (%p206) target = $region36
      $region35: #{tpu_custom_call.1} parent=31 // pred_region
        %s209 = smul.u32 32, %s13
        %p210 = scmp.lt.s32.totalorder %s209, 63
        %s211 = scalar_select %p210, %s209, 63
        %s212 = smul.addr %s211, 8
        %s213 = scalar_lea.vmem %s0, %s212
        %s214 = smul.u32 32, %s13
      $region36: #{tpu_custom_call.1} parent=31 // pred_fallthru
        _
    $region32: #{tpu_custom_call.1} parent=5 // pred_fallthru
      _
    %p215 = scmp.le.s32.totalorder 1, %s13
    %p216 = scmp.lt.s32.totalorder %s13, 3
    %p217 = pnand %p215, %p216
    %p218 = pneg %p217
    // Predicated region
    $region37: #{tpu_custom_call.1} parent=5 // pred_check
      _
    $region38: #{tpu_custom_call.1} parent=5 // pred_check_branch
      %220 = sbr.rel (%p217) target = $region40
    $region39: #{tpu_custom_call.1} parent=5 // pred_region
      %s221 = ssub.s32 %s13, 1
      %s222 = smul.u32 32, %s18
      %p223 = scmp.lt.s32.totalorder %s222, 63
      %s224 = scalar_select %p223, %s222, 63
      %s225 = smul.addr %s224, 8
      %s226 = scalar_lea.vmem %s0, %s225
      %p227 = pneg %p39
      %p228 = pneg %p36
      %p229 = pneg %p60
      %p230 = pneg %p57
      %p231 = pneg %p81
      %p232 = pneg %p78
      %p233 = pneg %p102
      %p234 = pneg %p99
      %p235 = pneg %p123
      %p236 = pneg %p120
      %p237 = pneg %p149
      %p238 = pneg %p146
      %s239 = smul.u32 32, %s18
      %p240 = scmp.lt.s32.totalorder %s239, 63
      %s241 = scalar_select %p240, %s239, 63
      %s242 = smul.addr %s241, 8
      %s243 = scalar_lea.vmem %s5, %s242
      %p244 = pneg %p175
      %p245 = pneg %p172
      %s246 = smul.u32 32, %s18
      %p247 = scmp.lt.s32.totalorder %s246, 63
      %s248 = scalar_select %p247, %s246, 63
      %s249 = smul.addr %s248, 8
      %s250 = scalar_lea.vmem %s6, %s249
      %s251 = smul.u32 32, %s18
      %p252 = scmp.lt.s32.totalorder %s251, 63
      %s253 = scalar_select %p252, %s251, 63
      %s254 = smul.addr %s253, 8
      %s255 = scalar_lea.vmem %s0, %s254
      %s256 = smul.u32 32, %s18
      %s257 = smul.u32 32, %s18
      %p258 = scmp.lt.s32.totalorder %s257, 63
      %s259 = scalar_select %p258, %s257, 63
      %s260 = smul.addr %s259, 8
      %s261 = scalar_lea.vmem %s5, %s260
      %s262 = smul.u32 32, %s18
      %s263 = smul.u32 32, %s18
      %p264 = scmp.lt.s32.totalorder %s263, 63
      %s265 = scalar_select %p264, %s263, 63
      %s266 = smul.addr %s265, 8
      %s267 = scalar_lea.vmem %s6, %s266
      %s268 = smul.u32 32, %s18
      %v269 = vld [vmem:[%s255] sm:$0xff]
      %v270 = vld [vmem:[%s255 + $0x8] sm:$0xff]
      %v271 = vld [vmem:[%s255 + $0x10] sm:$0xff]
      %v272 = vld [vmem:[%s255 + $0x18] sm:$0xff]
      %v273 = vld [vmem:[%s255 + $0x20] sm:$0xff]
      %v274 = vld [vmem:[%s255 + $0x28] sm:$0xff]
      %v275 = vld [vmem:[%s255 + $0x30] sm:$0xff]
      %v276 = vld [vmem:[%s255 + $0x38] sm:$0xff]
      %v277 = vld [vmem:[%s255 + $0x40] sm:$0xff]
      %v278 = vld [vmem:[%s255 + $0x48] sm:$0xff]
      %v279 = vld [vmem:[%s255 + $0x50] sm:$0xff]
      %v280 = vld [vmem:[%s255 + $0x58] sm:$0xff]
      %v281 = vld [vmem:[%s255 + $0x60] sm:$0xff]
      %v282 = vld [vmem:[%s255 + $0x68] sm:$0xff]
      %v283 = vld [vmem:[%s255 + $0x70] sm:$0xff]
      %v284 = vld [vmem:[%s255 + $0x78] sm:$0xff]
      %v285 = vld [vmem:[%s255 + $0x80] sm:$0xff]
      %v286 = vld [vmem:[%s255 + $0x88] sm:$0xff]
      %v287 = vld [vmem:[%s255 + $0x90] sm:$0xff]
      %v288 = vld [vmem:[%s255 + $0x98] sm:$0xff]
      %v289 = vld [vmem:[%s255 + $0xa0] sm:$0xff]
      %v290 = vld [vmem:[%s255 + $0xa8] sm:$0xff]
      %v291 = vld [vmem:[%s255 + $0xb0] sm:$0xff]
      %v292 = vld [vmem:[%s255 + $0xb8] sm:$0xff]
      %v293 = vld [vmem:[%s255 + $0xc0] sm:$0xff]
      %v294 = vld [vmem:[%s255 + $0xc8] sm:$0xff]
      %v295 = vld [vmem:[%s255 + $0xd0] sm:$0xff]
      %v296 = vld [vmem:[%s255 + $0xd8] sm:$0xff]
      %v297 = vld [vmem:[%s255 + $0xe0] sm:$0xff]
      %v298 = vld [vmem:[%s255 + $0xe8] sm:$0xff]
      %v299 = vld [vmem:[%s255 + $0xf0] sm:$0xff]
      %v300 = vld [vmem:[%s255 + $0xf8] sm:$0xff]
      %v301 = vld [vmem:[%s1] sm:$0xf]
      %v302 = vld [vmem:[%s2] sm:$0x1]
      %v304 = vlaneseq
      %v305 = vshrl.u32 %v304, 7
      %v306 = vsub.s32 0, %v305
      %v307 = vrot.slane %v302, %v306
      %vm309 = vcmask 31744
      %v311 = vsel %vm309, %v269, 0
      %v314 = vsel %vm309, %v270, 0
      %v317 = vsel %vm309, %v271, 0
      %v320 = vsel %vm309, %v272, 0
      %v323 = vsel %vm309, %v273, 0
      %v326 = vsel %vm309, %v274, 0
      %v329 = vsel %vm309, %v275, 0
      %v332 = vsel %vm309, %v276, 0
      %v335 = vsel %vm309, %v277, 0
      %v338 = vsel %vm309, %v278, 0
      %v341 = vsel %vm309, %v279, 0
      %v344 = vsel %vm309, %v280, 0
      %v347 = vsel %vm309, %v281, 0
      %v350 = vsel %vm309, %v282, 0
      %v353 = vsel %vm309, %v283, 0
      %v356 = vsel %vm309, %v284, 0
      %v359 = vsel %vm309, %v285, 0
      %v362 = vsel %vm309, %v286, 0
      %v365 = vsel %vm309, %v287, 0
      %v368 = vsel %vm309, %v288, 0
      %v371 = vsel %vm309, %v289, 0
      %v374 = vsel %vm309, %v290, 0
      %v377 = vsel %vm309, %v291, 0
      %v380 = vsel %vm309, %v292, 0
      %v383 = vsel %vm309, %v293, 0
      %v386 = vsel %vm309, %v294, 0
      %v389 = vsel %vm309, %v295, 0
      %v392 = vsel %vm309, %v296, 0
      %v395 = vsel %vm309, %v297, 0
      %v398 = vsel %vm309, %v298, 0
      %v401 = vsel %vm309, %v299, 0
      %v404 = vsel %vm309, %v300, 0
      %vm406 = vcmask 1043456
      %v408 = vsel %vm406, %v301, 0
      %410 = vmatprep.subr.mxu0 0.0
      %411 = vmatpush1.msra.mxu0 %v408
      %412 = vmatprep.subr.mxu0 0.0
      %413 = vmatpush1.msra.mxu0 0.0
      %414 = vmatprep.subr.mxu0 0.0
      %415 = vmatpush1.msra.mxu0 0.0
      %416 = vmatprep.subr.mxu0 0.0
      %417 = vmatpush1.msra.mxu0 0.0
      %418 = vmatprep.subr.mxu0 0.0
      %419 = vmatpush1.msra.mxu0 0.0
      %420 = vmatprep.subr.mxu0 0.0
      %421 = vmatpush1.msra.mxu0 0.0
      %422 = vmatprep.subr.mxu0 0.0
      %423 = vmatpush1.msra.mxu0 0.0
      %424 = vmatprep.subr.mxu0 0.0
      %425 = vmatpush1.msra.mxu0 0.0
      %426 = vmatprep.subr.mxu0 0.0
      %427 = vmatpush1.msra.mxu0 0.0
      %428 = vmatprep.subr.mxu0 0.0
      %429 = vmatpush1.msra.mxu0 0.0
      %430 = vmatprep.subr.mxu0 0.0
      %431 = vmatpush1.msra.mxu0 0.0
      %432 = vmatprep.subr.mxu0 0.0
      %433 = vmatpush1.msra.mxu0 0.0
      %434 = vmatprep.subr.mxu0 0.0
      %435 = vmatpush1.msra.mxu0 0.0
      %436 = vmatprep.subr.mxu0 0.0
      %437 = vmatpush1.msra.mxu0 0.0
      %438 = vmatprep.subr.mxu0 0.0
      %439 = vmatpush1.msra.mxu0 0.0
      %440 = vmatprep.subr.mxu0 0.0
      %441 = vmatpush1.msra.mxu0 0.0
      %442 = vmatprep.subr.mxu0 0.0
      %443 = vmatpush1.msra.mxu0 0.0
      %444 = vmatprep.subr.mxu0 0.0
      %445 = vmatpush1.msra.mxu0 0.0
      %446 = vmatprep.subr.mxu0 0.0
      %447 = vmatpush1.msra.mxu0 0.0
      %448 = vmatprep.subr.mxu0 0.0
      %449 = vmatpush1.msra.mxu0 0.0
      %450 = vmatprep.subr.mxu0 0.0
      %451 = vmatpush1.msra.mxu0 0.0
      %452 = vmatprep.subr.mxu0 0.0
      %453 = vmatpush1.msra.mxu0 0.0
      %454 = vmatprep.subr.mxu0 0.0
      %455 = vmatpush1.msra.mxu0 0.0
      %456 = vmatprep.subr.mxu0 0.0
      %457 = vmatpush1.msra.mxu0 0.0
      %458 = vmatprep.subr.mxu0 0.0
      %459 = vmatpush1.msra.mxu0 0.0
      %460 = vmatprep.subr.mxu0 0.0
      %461 = vmatpush1.msra.mxu0 0.0
      %462 = vmatprep.subr.mxu0 0.0
      %463 = vmatpush1.msra.mxu0 0.0
      %464 = vmatprep.subr.mxu0 0.0
      %465 = vmatpush1.msra.mxu0 0.0
      %466 = vmatprep.subr.mxu0 0.0
      %467 = vmatpush1.msra.mxu0 0.0
      %468 = vmatprep.subr.mxu0 0.0
      %469 = vmatpush1.msra.mxu0 0.0
      %470 = vmatprep.subr.mxu0 0.0
      %471 = vmatpush1.msra.mxu0 0.0
      %472 = vmatprep.subr.mxu0 0.0
      %473 = vmatpush1.msra.mxu0 0.0
      %474 = vmatprep.mubr.f32.mxu0 0.0
      %475 = vmatmul.mubr.f32.gmra.mrb[0].mxu0 %v311
      %v476 = vpop.f32.mrb[0].mxu0
      %v477 = vadd.f32 %v307, %v476
      %v478 = vpop.f32.mrb[0].mxu0
      %479 = vmatprep.mubr.f32.mxu0 0.0
      %480 = vmatmul.mubr.f32.gmra.mrb[0].mxu0 %v314
      %v481 = vpop.f32.mrb[0].mxu0
      %v482 = vadd.f32 %v307, %v481
      %v483 = vpop.f32.mrb[0].mxu0
      %484 = vmatprep.mubr.f32.mxu0 0.0
      %485 = vmatmul.mubr.f32.gmra.mrb[0].mxu0 %v317
      %v486 = vpop.f32.mrb[0].mxu0
      %v487 = vadd.f32 %v307, %v486
      %v488 = vpop.f32.mrb[0].mxu0
      %489 = vmatprep.mubr.f32.mxu0 0.0
      %490 = vmatmul.mubr.f32.gmra.mrb[0].mxu0 %v320
      %v491 = vpop.f32.mrb[0].mxu0
      %v492 = vadd.f32 %v307, %v491
      %v493 = vpop.f32.mrb[0].mxu0
      %494 = vmatprep.mubr.f32.mxu0 0.0
      %495 = vmatmul.mubr.f32.gmra.mrb[0].mxu0 %v323
      %v496 = vpop.f32.mrb[0].mxu0
      %v497 = vadd.f32 %v307, %v496
      %v498 = vpop.f32.mrb[0].mxu0
      %499 = vmatprep.mubr.f32.mxu0 0.0
      %500 = vmatmul.mubr.f32.gmra.mrb[0].mxu0 %v326
      %v501 = vpop.f32.mrb[0].mxu0
      %v502 = vadd.f32 %v307, %v501
      %v503 = vpop.f32.mrb[0].mxu0
      %504 = vmatprep.mubr.f32.mxu0 0.0
      %505 = vmatmul.mubr.f32.gmra.mrb[0].mxu0 %v329
      %v506 = vpop.f32.mrb[0].mxu0
      %v507 = vadd.f32 %v307, %v506
      %v508 = vpop.f32.mrb[0].mxu0
      %509 = vmatprep.mubr.f32.mxu0 0.0
      %510 = vmatmul.mubr.f32.gmra.mrb[0].mxu0 %v332
      %v511 = vpop.f32.mrb[0].mxu0
      %v512 = vadd.f32 %v307, %v511
      %v513 = vpop.f32.mrb[0].mxu0
      %514 = vmatprep.mubr.f32.mxu0 0.0
      %515 = vmatmul.mubr.f32.gmra.mrb[0].mxu0 %v335
      %v516 = vpop.f32.mrb[0].mxu0
      %v517 = vadd.f32 %v307, %v516
      %v518 = vpop.f32.mrb[0].mxu0
      %519 = vmatprep.mubr.f32.mxu0 0.0
      %520 = vmatmul.mubr.f32.gmra.mrb[0].mxu0 %v338
      %v521 = vpop.f32.mrb[0].mxu0
      %v522 = vadd.f32 %v307, %v521
      %v523 = vpop.f32.mrb[0].mxu0
      %524 = vmatprep.mubr.f32.mxu0 0.0
      %525 = vmatmul.mubr.f32.gmra.mrb[0].mxu0 %v341
      %v526 = vpop.f32.mrb[0].mxu0
      %v527 = vadd.f32 %v307, %v526
      %v528 = vpop.f32.mrb[0].mxu0
      %529 = vmatprep.mubr.f32.mxu0 0.0
      %530 = vmatmul.mubr.f32.gmra.mrb[0].mxu0 %v344
      %v531 = vpop.f32.mrb[0].mxu0
      %v532 = vadd.f32 %v307, %v531
      %v533 = vpop.f32.mrb[0].mxu0
      %534 = vmatprep.mubr.f32.mxu0 0.0
      %535 = vmatmul.mubr.f32.gmra.mrb[0].mxu0 %v347
      %v536 = vpop.f32.mrb[0].mxu0
      %v537 = vadd.f32 %v307, %v536
      %v538 = vpop.f32.mrb[0].mxu0
      %539 = vmatprep.mubr.f32.mxu0 0.0
      %540 = vmatmul.mubr.f32.gmra.mrb[0].mxu0 %v350
      %v541 = vpop.f32.mrb[0].mxu0
      %v542 = vadd.f32 %v307, %v541
      %v543 = vpop.f32.mrb[0].mxu0
      %544 = vmatprep.mubr.f32.mxu0 0.0
      %545 = vmatmul.mubr.f32.gmra.mrb[0].mxu0 %v353
      %v546 = vpop.f32.mrb[0].mxu0
      %v547 = vadd.f32 %v307, %v546
      %v548 = vpop.f32.mrb[0].mxu0
      %549 = vmatprep.mubr.f32.mxu0 0.0
      %550 = vmatmul.mubr.f32.gmra.mrb[0].mxu0 %v356
      %v551 = vpop.f32.mrb[0].mxu0
      %v552 = vadd.f32 %v307, %v551
      %v553 = vpop.f32.mrb[0].mxu0
      %554 = vmatprep.mubr.f32.mxu0 0.0
      %555 = vmatmul.mubr.f32.gmra.mrb[0].mxu0 %v359
      %v556 = vpop.f32.mrb[0].mxu0
      %v557 = vadd.f32 %v307, %v556
      %v558 = vpop.f32.mrb[0].mxu0
      %559 = vmatprep.mubr.f32.mxu0 0.0
      %560 = vmatmul.mubr.f32.gmra.mrb[0].mxu0 %v362
      %v561 = vpop.f32.mrb[0].mxu0
      %v562 = vadd.f32 %v307, %v561
      %v563 = vpop.f32.mrb[0].mxu0
      %564 = vmatprep.mubr.f32.mxu0 0.0
      %565 = vmatmul.mubr.f32.gmra.mrb[0].mxu0 %v365
      %v566 = vpop.f32.mrb[0].mxu0
      %v567 = vadd.f32 %v307, %v566
      %v568 = vpop.f32.mrb[0].mxu0
      %569 = vmatprep.mubr.f32.mxu0 0.0
      %570 = vmatmul.mubr.f32.gmra.mrb[0].mxu0 %v368
      %v571 = vpop.f32.mrb[0].mxu0
      %v572 = vadd.f32 %v307, %v571
      %v573 = vpop.f32.mrb[0].mxu0
      %574 = vmatprep.mubr.f32.mxu0 0.0
      %575 = vmatmul.mubr.f32.gmra.mrb[0].mxu0 %v371
      %v576 = vpop.f32.mrb[0].mxu0
      %v577 = vadd.f32 %v307, %v576
      %v578 = vpop.f32.mrb[0].mxu0
      %579 = vmatprep.mubr.f32.mxu0 0.0
      %580 = vmatmul.mubr.f32.gmra.mrb[0].mxu0 %v374
      %v581 = vpop.f32.mrb[0].mxu0
      %v582 = vadd.f32 %v307, %v581
      %v583 = vpop.f32.mrb[0].mxu0
      %584 = vmatprep.mubr.f32.mxu0 0.0
      %585 = vmatmul.mubr.f32.gmra.mrb[0].mxu0 %v377
      %v586 = vpop.f32.mrb[0].mxu0
      %v587 = vadd.f32 %v307, %v586
      %v588 = vpop.f32.mrb[0].mxu0
      %589 = vmatprep.mubr.f32.mxu0 0.0
      %590 = vmatmul.mubr.f32.gmra.mrb[0].mxu0 %v380
      %v591 = vpop.f32.mrb[0].mxu0
      %v592 = vadd.f32 %v307, %v591
      %v593 = vpop.f32.mrb[0].mxu0
      %594 = vmatprep.mubr.f32.mxu0 0.0
      %595 = vmatmul.mubr.f32.gmra.mrb[0].mxu0 %v383
      %v596 = vpop.f32.mrb[0].mxu0
      %v597 = vadd.f32 %v307, %v596
      %v598 = vpop.f32.mrb[0].mxu0
      %599 = vmatprep.mubr.f32.mxu0 0.0
      %600 = vmatmul.mubr.f32.gmra.mrb[0].mxu0 %v386
      %v601 = vpop.f32.mrb[0].mxu0
      %v602 = vadd.f32 %v307, %v601
      %v603 = vpop.f32.mrb[0].mxu0
      %604 = vmatprep.mubr.f32.mxu0 0.0
      %605 = vmatmul.mubr.f32.gmra.mrb[0].mxu0 %v389
      %v606 = vpop.f32.mrb[0].mxu0
      %v607 = vadd.f32 %v307, %v606
      %v608 = vpop.f32.mrb[0].mxu0
      %609 = vmatprep.mubr.f32.mxu0 0.0
      %610 = vmatmul.mubr.f32.gmra.mrb[0].mxu0 %v392
      %v611 = vpop.f32.mrb[0].mxu0
      %v612 = vadd.f32 %v307, %v611
      %v613 = vpop.f32.mrb[0].mxu0
      %614 = vmatprep.mubr.f32.mxu0 0.0
      %615 = vmatmul.mubr.f32.gmra.mrb[0].mxu0 %v395
      %v616 = vpop.f32.mrb[0].mxu0
      %v617 = vadd.f32 %v307, %v616
      %v618 = vpop.f32.mrb[0].mxu0
      %619 = vmatprep.mubr.f32.mxu0 0.0
      %620 = vmatmul.mubr.f32.gmra.mrb[0].mxu0 %v398
      %v621 = vpop.f32.mrb[0].mxu0
      %v622 = vadd.f32 %v307, %v621
      %v623 = vpop.f32.mrb[0].mxu0
      %624 = vmatprep.mubr.f32.mxu0 0.0
      %625 = vmatmul.mubr.f32.gmra.mrb[0].mxu0 %v401
      %v626 = vpop.f32.mrb[0].mxu0
      %v627 = vadd.f32 %v307, %v626
      %v628 = vpop.f32.mrb[0].mxu0
      %629 = vmatprep.mubr.f32.mxu0 0.0
      %630 = vmatmul.mubr.f32.gmra.mrb[0].mxu0 %v404
      %v631 = vpop.f32.mrb[0].mxu0
      %v632 = vadd.f32 %v307, %v631
      %v633 = vpop.f32.mrb[0].mxu0
      %634 = vdwg.mxu0
      %v635 = vsub.f32 0.0, %v477
      %v636 = vsub.f32 0.0, %v482
      %v637 = vsub.f32 0.0, %v487
      %v638 = vsub.f32 0.0, %v492
      %v639 = vsub.f32 0.0, %v497
      %v640 = vsub.f32 0.0, %v502
      %v641 = vsub.f32 0.0, %v507
      %v642 = vsub.f32 0.0, %v512
      %v643 = vsub.f32 0.0, %v517
      %v644 = vsub.f32 0.0, %v522
      %v645 = vsub.f32 0.0, %v527
      %v646 = vsub.f32 0.0, %v532
      %v647 = vsub.f32 0.0, %v537
      %v648 = vsub.f32 0.0, %v542
      %v649 = vsub.f32 0.0, %v547
      %v650 = vsub.f32 0.0, %v552
      %v651 = vsub.f32 0.0, %v557
      %v652 = vsub.f32 0.0, %v562
      %v653 = vsub.f32 0.0, %v567
      %v654 = vsub.f32 0.0, %v572
      %v655 = vsub.f32 0.0, %v577
      %v656 = vsub.f32 0.0, %v582
      %v657 = vsub.f32 0.0, %v587
      %v658 = vsub.f32 0.0, %v592
      %v659 = vsub.f32 0.0, %v597
      %v660 = vsub.f32 0.0, %v602
      %v661 = vsub.f32 0.0, %v607
      %v662 = vsub.f32 0.0, %v612
      %v663 = vsub.f32 0.0, %v617
      %v664 = vsub.f32 0.0, %v622
      %v665 = vsub.f32 0.0, %v627
      %v666 = vsub.f32 0.0, %v632
      %v667 = vmul.f32 %v635, 1.442695
      %v668 = vpow.pop %v667
      %v669 = vmul.f32 %v636, 1.442695
      %v670 = vpow.pop %v669
      %v671 = vmul.f32 %v637, 1.442695
      %v672 = vpow.pop %v671
      %v673 = vmul.f32 %v638, 1.442695
      %v674 = vpow.pop %v673
      %v675 = vmul.f32 %v639, 1.442695
      %v676 = vpow.pop %v675
      %v677 = vmul.f32 %v640, 1.442695
      %v678 = vpow.pop %v677
      %v679 = vmul.f32 %v641, 1.442695
      %v680 = vpow.pop %v679
      %v681 = vmul.f32 %v642, 1.442695
      %v682 = vpow.pop %v681
      %v683 = vmul.f32 %v643, 1.442695
      %v684 = vpow.pop %v683
      %v685 = vmul.f32 %v644, 1.442695
      %v686 = vpow.pop %v685
      %v687 = vmul.f32 %v645, 1.442695
      %v688 = vpow.pop %v687
      %v689 = vmul.f32 %v646, 1.442695
      %v690 = vpow.pop %v689
      %v691 = vmul.f32 %v647, 1.442695
      %v692 = vpow.pop %v691
      %v693 = vmul.f32 %v648, 1.442695
      %v694 = vpow.pop %v693
      %v695 = vmul.f32 %v649, 1.442695
      %v696 = vpow.pop %v695
      %v697 = vmul.f32 %v650, 1.442695
      %v698 = vpow.pop %v697
      %v699 = vmul.f32 %v651, 1.442695
      %v700 = vpow.pop %v699
      %v701 = vmul.f32 %v652, 1.442695
      %v702 = vpow.pop %v701
      %v703 = vmul.f32 %v653, 1.442695
      %v704 = vpow.pop %v703
      %v705 = vmul.f32 %v654, 1.442695
      %v706 = vpow.pop %v705
      %v707 = vmul.f32 %v655, 1.442695
      %v708 = vpow.pop %v707
      %v709 = vmul.f32 %v656, 1.442695
      %v710 = vpow.pop %v709
      %v711 = vmul.f32 %v657, 1.442695
      %v712 = vpow.pop %v711
      %v713 = vmul.f32 %v658, 1.442695
      %v714 = vpow.pop %v713
      %v715 = vmul.f32 %v659, 1.442695
      %v716 = vpow.pop %v715
      %v717 = vmul.f32 %v660, 1.442695
      %v718 = vpow.pop %v717
      %v719 = vmul.f32 %v661, 1.442695
      %v720 = vpow.pop %v719
      %v721 = vmul.f32 %v662, 1.442695
      %v722 = vpow.pop %v721
      %v723 = vmul.f32 %v663, 1.442695
      %v724 = vpow.pop %v723
      %v725 = vmul.f32 %v664, 1.442695
      %v726 = vpow.pop %v725
      %v727 = vmul.f32 %v665, 1.442695
      %v728 = vpow.pop %v727
      %v729 = vmul.f32 %v666, 1.442695
      %v730 = vpow.pop %v729
      %v731 = vadd.f32 %v668, 1.0
      %v732 = vadd.f32 %v670, 1.0
      %v733 = vadd.f32 %v672, 1.0
      %v734 = vadd.f32 %v674, 1.0
      %v735 = vadd.f32 %v676, 1.0
      %v736 = vadd.f32 %v678, 1.0
      %v737 = vadd.f32 %v680, 1.0
      %v738 = vadd.f32 %v682, 1.0
      %v739 = vadd.f32 %v684, 1.0
      %v740 = vadd.f32 %v686, 1.0
      %v741 = vadd.f32 %v688, 1.0
      %v742 = vadd.f32 %v690, 1.0
      %v743 = vadd.f32 %v692, 1.0
      %v744 = vadd.f32 %v694, 1.0
      %v745 = vadd.f32 %v696, 1.0
      %v746 = vadd.f32 %v698, 1.0
      %v747 = vadd.f32 %v700, 1.0
      %v748 = vadd.f32 %v702, 1.0
      %v749 = vadd.f32 %v704, 1.0
      %v750 = vadd.f32 %v706, 1.0
      %v751 = vadd.f32 %v708, 1.0
      %v752 = vadd.f32 %v710, 1.0
      %v753 = vadd.f32 %v712, 1.0
      %v754 = vadd.f32 %v714, 1.0
      %v755 = vadd.f32 %v716, 1.0
      %v756 = vadd.f32 %v718, 1.0
      %v757 = vadd.f32 %v720, 1.0
      %v758 = vadd.f32 %v722, 1.0
      %v759 = vadd.f32 %v724, 1.0
      %v760 = vadd.f32 %v726, 1.0
      %v761 = vadd.f32 %v728, 1.0
      %v762 = vadd.f32 %v730, 1.0
      %v763 = vrcp.pop %v731
      %v764 = vmul.f32 1.0, %v763
      %v765 = vrcp.pop %v732
      %v766 = vmul.f32 1.0, %v765
      %v767 = vrcp.pop %v733
      %v768 = vmul.f32 1.0, %v767
      %v769 = vrcp.pop %v734
      %v770 = vmul.f32 1.0, %v769
      %v771 = vrcp.pop %v735
      %v772 = vmul.f32 1.0, %v771
      %v773 = vrcp.pop %v736
      %v774 = vmul.f32 1.0, %v773
      %v775 = vrcp.pop %v737
      %v776 = vmul.f32 1.0, %v775
      %v777 = vrcp.pop %v738
      %v778 = vmul.f32 1.0, %v777
      %v779 = vrcp.pop %v739
      %v780 = vmul.f32 1.0, %v779
      %v781 = vrcp.pop %v740
      %v782 = vmul.f32 1.0, %v781
      %v783 = vrcp.pop %v741
      %v784 = vmul.f32 1.0, %v783
      %v785 = vrcp.pop %v742
      %v786 = vmul.f32 1.0, %v785
      %v787 = vrcp.pop %v743
      %v788 = vmul.f32 1.0, %v787
      %v789 = vrcp.pop %v744
      %v790 = vmul.f32 1.0, %v789
      %v791 = vrcp.pop %v745
      %v792 = vmul.f32 1.0, %v791
      %v793 = vrcp.pop %v746
      %v794 = vmul.f32 1.0, %v793
      %v795 = vrcp.pop %v747
      %v796 = vmul.f32 1.0, %v795
      %v797 = vrcp.pop %v748
      %v798 = vmul.f32 1.0, %v797
      %v799 = vrcp.pop %v749
      %v800 = vmul.f32 1.0, %v799
      %v801 = vrcp.pop %v750
      %v802 = vmul.f32 1.0, %v801
      %v803 = vrcp.pop %v751
      %v804 = vmul.f32 1.0, %v803
      %v805 = vrcp.pop %v752
      %v806 = vmul.f32 1.0, %v805
      %v807 = vrcp.pop %v753
      %v808 = vmul.f32 1.0, %v807
      %v809 = vrcp.pop %v754
      %v810 = vmul.f32 1.0, %v809
      %v811 = vrcp.pop %v755
      %v812 = vmul.f32 1.0, %v811
      %v813 = vrcp.pop %v756
      %v814 = vmul.f32 1.0, %v813
      %v815 = vrcp.pop %v757
      %v816 = vmul.f32 1.0, %v815
      %v817 = vrcp.pop %v758
      %v818 = vmul.f32 1.0, %v817
      %v819 = vrcp.pop %v759
      %v820 = vmul.f32 1.0, %v819
      %v821 = vrcp.pop %v760
      %v822 = vmul.f32 1.0, %v821
      %v823 = vrcp.pop %v761
      %v824 = vmul.f32 1.0, %v823
      %v825 = vrcp.pop %v762
      %v826 = vmul.f32 1.0, %v825
      %v827 = vmul.f32 %v477, %v764
      %v828 = vmul.f32 %v482, %v766
      %v829 = vmul.f32 %v487, %v768
      %v830 = vmul.f32 %v492, %v770
      %v831 = vmul.f32 %v497, %v772
      %v832 = vmul.f32 %v502, %v774
      %v833 = vmul.f32 %v507, %v776
      %v834 = vmul.f32 %v512, %v778
      %v835 = vmul.f32 %v517, %v780
      %v836 = vmul.f32 %v522, %v782
      %v837 = vmul.f32 %v527, %v784
      %v838 = vmul.f32 %v532, %v786
      %v839 = vmul.f32 %v537, %v788
      %v840 = vmul.f32 %v542, %v790
      %v841 = vmul.f32 %v547, %v792
      %v842 = vmul.f32 %v552, %v794
      %v843 = vmul.f32 %v557, %v796
      %v844 = vmul.f32 %v562, %v798
      %v845 = vmul.f32 %v567, %v800
      %v846 = vmul.f32 %v572, %v802
      %v847 = vmul.f32 %v577, %v804
      %v848 = vmul.f32 %v582, %v806
      %v849 = vmul.f32 %v587, %v808
      %v850 = vmul.f32 %v592, %v810
      %v851 = vmul.f32 %v597, %v812
      %v852 = vmul.f32 %v602, %v814
      %v853 = vmul.f32 %v607, %v816
      %v854 = vmul.f32 %v612, %v818
      %v855 = vmul.f32 %v617, %v820
      %v856 = vmul.f32 %v622, %v822
      %v857 = vmul.f32 %v627, %v824
      %v858 = vmul.f32 %v632, %v826
      %vm859 = vcmask 15360
      %860 = vst.msk [vmem:[%s261] sm:$0xff] %vm859, %v827
      %861 = vst.msk [vmem:[%s261 + $0x8] sm:$0xff] %vm859, %v828
      %862 = vst.msk [vmem:[%s261 + $0x10] sm:$0xff] %vm859, %v829
      %863 = vst.msk [vmem:[%s261 + $0x18] sm:$0xff] %vm859, %v830
      %864 = vst.msk [vmem:[%s261 + $0x20] sm:$0xff] %vm859, %v831
      %865 = vst.msk [vmem:[%s261 + $0x28] sm:$0xff] %vm859, %v832
      %866 = vst.msk [vmem:[%s261 + $0x30] sm:$0xff] %vm859, %v833
      %867 = vst.msk [vmem:[%s261 + $0x38] sm:$0xff] %vm859, %v834
      %868 = vst.msk [vmem:[%s261 + $0x40] sm:$0xff] %vm859, %v835
      %869 = vst.msk [vmem:[%s261 + $0x48] sm:$0xff] %vm859, %v836
      %870 = vst.msk [vmem:[%s261 + $0x50] sm:$0xff] %vm859, %v837
      %871 = vst.msk [vmem:[%s261 + $0x58] sm:$0xff] %vm859, %v838
      %872 = vst.msk [vmem:[%s261 + $0x60] sm:$0xff] %vm859, %v839
      %873 = vst.msk [vmem:[%s261 + $0x68] sm:$0xff] %vm859, %v840
      %874 = vst.msk [vmem:[%s261 + $0x70] sm:$0xff] %vm859, %v841
      %875 = vst.msk [vmem:[%s261 + $0x78] sm:$0xff] %vm859, %v842
      %876 = vst.msk [vmem:[%s261 + $0x80] sm:$0xff] %vm859, %v843
      %877 = vst.msk [vmem:[%s261 + $0x88] sm:$0xff] %vm859, %v844
      %878 = vst.msk [vmem:[%s261 + $0x90] sm:$0xff] %vm859, %v845
      %879 = vst.msk [vmem:[%s261 + $0x98] sm:$0xff] %vm859, %v846
      %880 = vst.msk [vmem:[%s261 + $0xa0] sm:$0xff] %vm859, %v847
      %881 = vst.msk [vmem:[%s261 + $0xa8] sm:$0xff] %vm859, %v848
      %882 = vst.msk [vmem:[%s261 + $0xb0] sm:$0xff] %vm859, %v849
      %883 = vst.msk [vmem:[%s261 + $0xb8] sm:$0xff] %vm859, %v850
      %884 = vst.msk [vmem:[%s261 + $0xc0] sm:$0xff] %vm859, %v851
      %885 = vst.msk [vmem:[%s261 + $0xc8] sm:$0xff] %vm859, %v852
      %886 = vst.msk [vmem:[%s261 + $0xd0] sm:$0xff] %vm859, %v853
      %887 = vst.msk [vmem:[%s261 + $0xd8] sm:$0xff] %vm859, %v854
      %888 = vst.msk [vmem:[%s261 + $0xe0] sm:$0xff] %vm859, %v855
      %889 = vst.msk [vmem:[%s261 + $0xe8] sm:$0xff] %vm859, %v856
      %890 = vst.msk [vmem:[%s261 + $0xf0] sm:$0xff] %vm859, %v857
      %891 = vst.msk [vmem:[%s261 + $0xf8] sm:$0xff] %vm859, %v858
      %v892 = vld [vmem:[%s3] sm:$0xf]
      %v893 = vld [vmem:[%s4] sm:$0x1]
      %v895 = vlaneseq
      %v896 = vshrl.u32 %v895, 7
      %v897 = vsub.s32 0, %v896
      %v898 = vrot.slane %v893, %v897
      %v901 = vsel %vm406, %v892, 0
      %903 = vmatprep.subr.mxu0 0.0
      %904 = vmatpush1.msra.mxu0 %v901
      %905 = vmatprep.subr.mxu0 0.0
      %906 = vmatpush1.msra.mxu0 0.0
      %907 = vmatprep.subr.mxu0 0.0
      %908 = vmatpush1.msra.mxu0 0.0
      %909 = vmatprep.subr.mxu0 0.0
      %910 = vmatpush1.msra.mxu0 0.0
      %911 = vmatprep.subr.mxu0 0.0
      %912 = vmatpush1.msra.mxu0 0.0
      %913 = vmatprep.subr.mxu0 0.0
      %914 = vmatpush1.msra.mxu0 0.0
      %915 = vmatprep.subr.mxu0 0.0
      %916 = vmatpush1.msra.mxu0 0.0
      %917 = vmatprep.subr.mxu0 0.0
      %918 = vmatpush1.msra.mxu0 0.0
      %919 = vmatprep.subr.mxu0 0.0
      %920 = vmatpush1.msra.mxu0 0.0
      %921 = vmatprep.subr.mxu0 0.0
      %922 = vmatpush1.msra.mxu0 0.0
      %923 = vmatprep.subr.mxu0 0.0
      %924 = vmatpush1.msra.mxu0 0.0
      %925 = vmatprep.subr.mxu0 0.0
      %926 = vmatpush1.msra.mxu0 0.0
      %927 = vmatprep.subr.mxu0 0.0
      %928 = vmatpush1.msra.mxu0 0.0
      %929 = vmatprep.subr.mxu0 0.0
      %930 = vmatpush1.msra.mxu0 0.0
      %931 = vmatprep.subr.mxu0 0.0
      %932 = vmatpush1.msra.mxu0 0.0
      %933 = vmatprep.subr.mxu0 0.0
      %934 = vmatpush1.msra.mxu0 0.0
      %935 = vmatprep.subr.mxu0 0.0
      %936 = vmatpush1.msra.mxu0 0.0
      %937 = vmatprep.subr.mxu0 0.0
      %938 = vmatpush1.msra.mxu0 0.0
      %939 = vmatprep.subr.mxu0 0.0
      %940 = vmatpush1.msra.mxu0 0.0
      %941 = vmatprep.subr.mxu0 0.0
      %942 = vmatpush1.msra.mxu0 0.0
      %943 = vmatprep.subr.mxu0 0.0
      %944 = vmatpush1.msra.mxu0 0.0
      %945 = vmatprep.subr.mxu0 0.0
      %946 = vmatpush1.msra.mxu0 0.0
      %947 = vmatprep.subr.mxu0 0.0
      %948 = vmatpush1.msra.mxu0 0.0
      %949 = vmatprep.subr.mxu0 0.0
      %950 = vmatpush1.msra.mxu0 0.0
      %951 = vmatprep.subr.mxu0 0.0
      %952 = vmatpush1.msra.mxu0 0.0
      %953 = vmatprep.subr.mxu0 0.0
      %954 = vmatpush1.msra.mxu0 0.0
      %955 = vmatprep.subr.mxu0 0.0
      %956 = vmatpush1.msra.mxu0 0.0
      %957 = vmatprep.subr.mxu0 0.0
      %958 = vmatpush1.msra.mxu0 0.0
      %959 = vmatprep.subr.mxu0 0.0
      %960 = vmatpush1.msra.mxu0 0.0
      %961 = vmatprep.subr.mxu0 0.0
      %962 = vmatpush1.msra.mxu0 0.0
      %963 = vmatprep.subr.mxu0 0.0
      %964 = vmatpush1.msra.mxu0 0.0
      %965 = vmatprep.subr.mxu0 0.0
      %966 = vmatpush1.msra.mxu0 0.0
      %967 = vmatprep.mubr.f32.mxu0 0.0
      %968 = vmatmul.mubr.f32.gmra.mrb[0].mxu0 %v311
      %v969 = vpop.f32.mrb[0].mxu0
      %v970 = vadd.f32 %v898, %v969
      %v971 = vpop.f32.mrb[0].mxu0
      %972 = vmatprep.mubr.f32.mxu0 0.0
      %973 = vmatmul.mubr.f32.gmra.mrb[0].mxu0 %v314
      %v974 = vpop.f32.mrb[0].mxu0
      %v975 = vadd.f32 %v898, %v974
      %v976 = vpop.f32.mrb[0].mxu0
      %977 = vmatprep.mubr.f32.mxu0 0.0
      %978 = vmatmul.mubr.f32.gmra.mrb[0].mxu0 %v317
      %v979 = vpop.f32.mrb[0].mxu0
      %v980 = vadd.f32 %v898, %v979
      %v981 = vpop.f32.mrb[0].mxu0
      %982 = vmatprep.mubr.f32.mxu0 0.0
      %983 = vmatmul.mubr.f32.gmra.mrb[0].mxu0 %v320
      %v984 = vpop.f32.mrb[0].mxu0
      %v985 = vadd.f32 %v898, %v984
      %v986 = vpop.f32.mrb[0].mxu0
      %987 = vmatprep.mubr.f32.mxu0 0.0
      %988 = vmatmul.mubr.f32.gmra.mrb[0].mxu0 %v323
      %v989 = vpop.f32.mrb[0].mxu0
      %v990 = vadd.f32 %v898, %v989
      %v991 = vpop.f32.mrb[0].mxu0
      %992 = vmatprep.mubr.f32.mxu0 0.0
      %993 = vmatmul.mubr.f32.gmra.mrb[0].mxu0 %v326
      %v994 = vpop.f32.mrb[0].mxu0
      %v995 = vadd.f32 %v898, %v994
      %v996 = vpop.f32.mrb[0].mxu0
      %997 = vmatprep.mubr.f32.mxu0 0.0
      %998 = vmatmul.mubr.f32.gmra.mrb[0].mxu0 %v329
      %v999 = vpop.f32.mrb[0].mxu0
      %v1000 = vadd.f32 %v898, %v999
      %v1001 = vpop.f32.mrb[0].mxu0
      %1002 = vmatprep.mubr.f32.mxu0 0.0
      %1003 = vmatmul.mubr.f32.gmra.mrb[0].mxu0 %v332
      %v1004 = vpop.f32.mrb[0].mxu0
      %v1005 = vadd.f32 %v898, %v1004
      %v1006 = vpop.f32.mrb[0].mxu0
      %1007 = vmatprep.mubr.f32.mxu0 0.0
      %1008 = vmatmul.mubr.f32.gmra.mrb[0].mxu0 %v335
      %v1009 = vpop.f32.mrb[0].mxu0
      %v1010 = vadd.f32 %v898, %v1009
      %v1011 = vpop.f32.mrb[0].mxu0
      %1012 = vmatprep.mubr.f32.mxu0 0.0
      %1013 = vmatmul.mubr.f32.gmra.mrb[0].mxu0 %v338
      %v1014 = vpop.f32.mrb[0].mxu0
      %v1015 = vadd.f32 %v898, %v1014
      %v1016 = vpop.f32.mrb[0].mxu0
      %1017 = vmatprep.mubr.f32.mxu0 0.0
      %1018 = vmatmul.mubr.f32.gmra.mrb[0].mxu0 %v341
      %v1019 = vpop.f32.mrb[0].mxu0
      %v1020 = vadd.f32 %v898, %v1019
      %v1021 = vpop.f32.mrb[0].mxu0
      %1022 = vmatprep.mubr.f32.mxu0 0.0
      %1023 = vmatmul.mubr.f32.gmra.mrb[0].mxu0 %v344
      %v1024 = vpop.f32.mrb[0].mxu0
      %v1025 = vadd.f32 %v898, %v1024
      %v1026 = vpop.f32.mrb[0].mxu0
      %1027 = vmatprep.mubr.f32.mxu0 0.0
      %1028 = vmatmul.mubr.f32.gmra.mrb[0].mxu0 %v347
      %v1029 = vpop.f32.mrb[0].mxu0
      %v1030 = vadd.f32 %v898, %v1029
      %v1031 = vpop.f32.mrb[0].mxu0
      %1032 = vmatprep.mubr.f32.mxu0 0.0
      %1033 = vmatmul.mubr.f32.gmra.mrb[0].mxu0 %v350
      %v1034 = vpop.f32.mrb[0].mxu0
      %v1035 = vadd.f32 %v898, %v1034
      %v1036 = vpop.f32.mrb[0].mxu0
      %1037 = vmatprep.mubr.f32.mxu0 0.0
      %1038 = vmatmul.mubr.f32.gmra.mrb[0].mxu0 %v353
      %v1039 = vpop.f32.mrb[0].mxu0
      %v1040 = vadd.f32 %v898, %v1039
      %v1041 = vpop.f32.mrb[0].mxu0
      %1042 = vmatprep.mubr.f32.mxu0 0.0
      %1043 = vmatmul.mubr.f32.gmra.mrb[0].mxu0 %v356
      %v1044 = vpop.f32.mrb[0].mxu0
      %v1045 = vadd.f32 %v898, %v1044
      %v1046 = vpop.f32.mrb[0].mxu0
      %1047 = vmatprep.mubr.f32.mxu0 0.0
      %1048 = vmatmul.mubr.f32.gmra.mrb[0].mxu0 %v359
      %v1049 = vpop.f32.mrb[0].mxu0
      %v1050 = vadd.f32 %v898, %v1049
      %v1051 = vpop.f32.mrb[0].mxu0
      %1052 = vmatprep.mubr.f32.mxu0 0.0
      %1053 = vmatmul.mubr.f32.gmra.mrb[0].mxu0 %v362
      %v1054 = vpop.f32.mrb[0].mxu0
      %v1055 = vadd.f32 %v898, %v1054
      %v1056 = vpop.f32.mrb[0].mxu0
      %1057 = vmatprep.mubr.f32.mxu0 0.0
      %1058 = vmatmul.mubr.f32.gmra.mrb[0].mxu0 %v365
      %v1059 = vpop.f32.mrb[0].mxu0
      %v1060 = vadd.f32 %v898, %v1059
      %v1061 = vpop.f32.mrb[0].mxu0
      %1062 = vmatprep.mubr.f32.mxu0 0.0
      %1063 = vmatmul.mubr.f32.gmra.mrb[0].mxu0 %v368
      %v1064 = vpop.f32.mrb[0].mxu0
      %v1065 = vadd.f32 %v898, %v1064
      %v1066 = vpop.f32.mrb[0].mxu0
      %1067 = vmatprep.mubr.f32.mxu0 0.0
      %1068 = vmatmul.mubr.f32.gmra.mrb[0].mxu0 %v371
      %v1069 = vpop.f32.mrb[0].mxu0
      %v1070 = vadd.f32 %v898, %v1069
      %v1071 = vpop.f32.mrb[0].mxu0
      %1072 = vmatprep.mubr.f32.mxu0 0.0
      %1073 = vmatmul.mubr.f32.gmra.mrb[0].mxu0 %v374
      %v1074 = vpop.f32.mrb[0].mxu0
      %v1075 = vadd.f32 %v898, %v1074
      %v1076 = vpop.f32.mrb[0].mxu0
      %1077 = vmatprep.mubr.f32.mxu0 0.0
      %1078 = vmatmul.mubr.f32.gmra.mrb[0].mxu0 %v377
      %v1079 = vpop.f32.mrb[0].mxu0
      %v1080 = vadd.f32 %v898, %v1079
      %v1081 = vpop.f32.mrb[0].mxu0
      %1082 = vmatprep.mubr.f32.mxu0 0.0
      %1083 = vmatmul.mubr.f32.gmra.mrb[0].mxu0 %v380
      %v1084 = vpop.f32.mrb[0].mxu0
      %v1085 = vadd.f32 %v898, %v1084
      %v1086 = vpop.f32.mrb[0].mxu0
      %1087 = vmatprep.mubr.f32.mxu0 0.0
      %1088 = vmatmul.mubr.f32.gmra.mrb[0].mxu0 %v383
      %v1089 = vpop.f32.mrb[0].mxu0
      %v1090 = vadd.f32 %v898, %v1089
      %v1091 = vpop.f32.mrb[0].mxu0
      %1092 = vmatprep.mubr.f32.mxu0 0.0
      %1093 = vmatmul.mubr.f32.gmra.mrb[0].mxu0 %v386
      %v1094 = vpop.f32.mrb[0].mxu0
      %v1095 = vadd.f32 %v898, %v1094
      %v1096 = vpop.f32.mrb[0].mxu0
      %1097 = vmatprep.mubr.f32.mxu0 0.0
      %1098 = vmatmul.mubr.f32.gmra.mrb[0].mxu0 %v389
      %v1099 = vpop.f32.mrb[0].mxu0
      %v1100 = vadd.f32 %v898, %v1099
      %v1101 = vpop.f32.mrb[0].mxu0
      %1102 = vmatprep.mubr.f32.mxu0 0.0
      %1103 = vmatmul.mubr.f32.gmra.mrb[0].mxu0 %v392
      %v1104 = vpop.f32.mrb[0].mxu0
      %v1105 = vadd.f32 %v898, %v1104
      %v1106 = vpop.f32.mrb[0].mxu0
      %1107 = vmatprep.mubr.f32.mxu0 0.0
      %1108 = vmatmul.mubr.f32.gmra.mrb[0].mxu0 %v395
      %v1109 = vpop.f32.mrb[0].mxu0
      %v1110 = vadd.f32 %v898, %v1109
      %v1111 = vpop.f32.mrb[0].mxu0
      %1112 = vmatprep.mubr.f32.mxu0 0.0
      %1113 = vmatmul.mubr.f32.gmra.mrb[0].mxu0 %v398
      %v1114 = vpop.f32.mrb[0].mxu0
      %v1115 = vadd.f32 %v898, %v1114
      %v1116 = vpop.f32.mrb[0].mxu0
      %1117 = vmatprep.mubr.f32.mxu0 0.0
      %1118 = vmatmul.mubr.f32.gmra.mrb[0].mxu0 %v401
      %v1119 = vpop.f32.mrb[0].mxu0
      %v1120 = vadd.f32 %v898, %v1119
      %v1121 = vpop.f32.mrb[0].mxu0
      %1122 = vmatprep.mubr.f32.mxu0 0.0
      %1123 = vmatmul.mubr.f32.gmra.mrb[0].mxu0 %v404
      %v1124 = vpop.f32.mrb[0].mxu0
      %v1125 = vadd.f32 %v898, %v1124
      %v1126 = vpop.f32.mrb[0].mxu0
      %1127 = vdwg.mxu0
      %v1128 = vsub.f32 0.0, %v970
      %v1129 = vsub.f32 0.0, %v975
      %v1130 = vsub.f32 0.0, %v980
      %v1131 = vsub.f32 0.0, %v985
      %v1132 = vsub.f32 0.0, %v990
      %v1133 = vsub.f32 0.0, %v995
      %v1134 = vsub.f32 0.0, %v1000
      %v1135 = vsub.f32 0.0, %v1005
      %v1136 = vsub.f32 0.0, %v1010
      %v1137 = vsub.f32 0.0, %v1015
      %v1138 = vsub.f32 0.0, %v1020
      %v1139 = vsub.f32 0.0, %v1025
      %v1140 = vsub.f32 0.0, %v1030
      %v1141 = vsub.f32 0.0, %v1035
      %v1142 = vsub.f32 0.0, %v1040
      %v1143 = vsub.f32 0.0, %v1045
      %v1144 = vsub.f32 0.0, %v1050
      %v1145 = vsub.f32 0.0, %v1055
      %v1146 = vsub.f32 0.0, %v1060
      %v1147 = vsub.f32 0.0, %v1065
      %v1148 = vsub.f32 0.0, %v1070
      %v1149 = vsub.f32 0.0, %v1075
      %v1150 = vsub.f32 0.0, %v1080
      %v1151 = vsub.f32 0.0, %v1085
      %v1152 = vsub.f32 0.0, %v1090
      %v1153 = vsub.f32 0.0, %v1095
      %v1154 = vsub.f32 0.0, %v1100
      %v1155 = vsub.f32 0.0, %v1105
      %v1156 = vsub.f32 0.0, %v1110
      %v1157 = vsub.f32 0.0, %v1115
      %v1158 = vsub.f32 0.0, %v1120
      %v1159 = vsub.f32 0.0, %v1125
      %v1160 = vmul.f32 %v1128, 1.442695
      %v1161 = vpow.pop %v1160
      %v1162 = vmul.f32 %v1129, 1.442695
      %v1163 = vpow.pop %v1162
      %v1164 = vmul.f32 %v1130, 1.442695
      %v1165 = vpow.pop %v1164
      %v1166 = vmul.f32 %v1131, 1.442695
      %v1167 = vpow.pop %v1166
      %v1168 = vmul.f32 %v1132, 1.442695
      %v1169 = vpow.pop %v1168
      %v1170 = vmul.f32 %v1133, 1.442695
      %v1171 = vpow.pop %v1170
      %v1172 = vmul.f32 %v1134, 1.442695
      %v1173 = vpow.pop %v1172
      %v1174 = vmul.f32 %v1135, 1.442695
      %v1175 = vpow.pop %v1174
      %v1176 = vmul.f32 %v1136, 1.442695
      %v1177 = vpow.pop %v1176
      %v1178 = vmul.f32 %v1137, 1.442695
      %v1179 = vpow.pop %v1178
      %v1180 = vmul.f32 %v1138, 1.442695
      %v1181 = vpow.pop %v1180
      %v1182 = vmul.f32 %v1139, 1.442695
      %v1183 = vpow.pop %v1182
      %v1184 = vmul.f32 %v1140, 1.442695
      %v1185 = vpow.pop %v1184
      %v1186 = vmul.f32 %v1141, 1.442695
      %v1187 = vpow.pop %v1186
      %v1188 = vmul.f32 %v1142, 1.442695
      %v1189 = vpow.pop %v1188
      %v1190 = vmul.f32 %v1143, 1.442695
      %v1191 = vpow.pop %v1190
      %v1192 = vmul.f32 %v1144, 1.442695
      %v1193 = vpow.pop %v1192
      %v1194 = vmul.f32 %v1145, 1.442695
      %v1195 = vpow.pop %v1194
      %v1196 = vmul.f32 %v1146, 1.442695
      %v1197 = vpow.pop %v1196
      %v1198 = vmul.f32 %v1147, 1.442695
      %v1199 = vpow.pop %v1198
      %v1200 = vmul.f32 %v1148, 1.442695
      %v1201 = vpow.pop %v1200
      %v1202 = vmul.f32 %v1149, 1.442695
      %v1203 = vpow.pop %v1202
      %v1204 = vmul.f32 %v1150, 1.442695
      %v1205 = vpow.pop %v1204
      %v1206 = vmul.f32 %v1151, 1.442695
      %v1207 = vpow.pop %v1206
      %v1208 = vmul.f32 %v1152, 1.442695
      %v1209 = vpow.pop %v1208
      %v1210 = vmul.f32 %v1153, 1.442695
      %v1211 = vpow.pop %v1210
      %v1212 = vmul.f32 %v1154, 1.442695
      %v1213 = vpow.pop %v1212
      %v1214 = vmul.f32 %v1155, 1.442695
      %v1215 = vpow.pop %v1214
      %v1216 = vmul.f32 %v1156, 1.442695
      %v1217 = vpow.pop %v1216
      %v1218 = vmul.f32 %v1157, 1.442695
      %v1219 = vpow.pop %v1218
      %v1220 = vmul.f32 %v1158, 1.442695
      %v1221 = vpow.pop %v1220
      %v1222 = vmul.f32 %v1159, 1.442695
      %v1223 = vpow.pop %v1222
      %v1224 = vadd.f32 %v1161, 1.0
      %v1225 = vadd.f32 %v1163, 1.0
      %v1226 = vadd.f32 %v1165, 1.0
      %v1227 = vadd.f32 %v1167, 1.0
      %v1228 = vadd.f32 %v1169, 1.0
      %v1229 = vadd.f32 %v1171, 1.0
      %v1230 = vadd.f32 %v1173, 1.0
      %v1231 = vadd.f32 %v1175, 1.0
      %v1232 = vadd.f32 %v1177, 1.0
      %v1233 = vadd.f32 %v1179, 1.0
      %v1234 = vadd.f32 %v1181, 1.0
      %v1235 = vadd.f32 %v1183, 1.0
      %v1236 = vadd.f32 %v1185, 1.0
      %v1237 = vadd.f32 %v1187, 1.0
      %v1238 = vadd.f32 %v1189, 1.0
      %v1239 = vadd.f32 %v1191, 1.0
      %v1240 = vadd.f32 %v1193, 1.0
      %v1241 = vadd.f32 %v1195, 1.0
      %v1242 = vadd.f32 %v1197, 1.0
      %v1243 = vadd.f32 %v1199, 1.0
      %v1244 = vadd.f32 %v1201, 1.0
      %v1245 = vadd.f32 %v1203, 1.0
      %v1246 = vadd.f32 %v1205, 1.0
      %v1247 = vadd.f32 %v1207, 1.0
      %v1248 = vadd.f32 %v1209, 1.0
      %v1249 = vadd.f32 %v1211, 1.0
      %v1250 = vadd.f32 %v1213, 1.0
      %v1251 = vadd.f32 %v1215, 1.0
      %v1252 = vadd.f32 %v1217, 1.0
      %v1253 = vadd.f32 %v1219, 1.0
      %v1254 = vadd.f32 %v1221, 1.0
      %v1255 = vadd.f32 %v1223, 1.0
      %v1256 = vrcp.pop %v1224
      %v1257 = vmul.f32 1.0, %v1256
      %v1258 = vrcp.pop %v1225
      %v1259 = vmul.f32 1.0, %v1258
      %v1260 = vrcp.pop %v1226
      %v1261 = vmul.f32 1.0, %v1260
      %v1262 = vrcp.pop %v1227
      %v1263 = vmul.f32 1.0, %v1262
      %v1264 = vrcp.pop %v1228
      %v1265 = vmul.f32 1.0, %v1264
      %v1266 = vrcp.pop %v1229
      %v1267 = vmul.f32 1.0, %v1266
      %v1268 = vrcp.pop %v1230
      %v1269 = vmul.f32 1.0, %v1268
      %v1270 = vrcp.pop %v1231
      %v1271 = vmul.f32 1.0, %v1270
      %v1272 = vrcp.pop %v1232
      %v1273 = vmul.f32 1.0, %v1272
      %v1274 = vrcp.pop %v1233
      %v1275 = vmul.f32 1.0, %v1274
      %v1276 = vrcp.pop %v1234
      %v1277 = vmul.f32 1.0, %v1276
      %v1278 = vrcp.pop %v1235
      %v1279 = vmul.f32 1.0, %v1278
      %v1280 = vrcp.pop %v1236
      %v1281 = vmul.f32 1.0, %v1280
      %v1282 = vrcp.pop %v1237
      %v1283 = vmul.f32 1.0, %v1282
      %v1284 = vrcp.pop %v1238
      %v1285 = vmul.f32 1.0, %v1284
      %v1286 = vrcp.pop %v1239
      %v1287 = vmul.f32 1.0, %v1286
      %v1288 = vrcp.pop %v1240
      %v1289 = vmul.f32 1.0, %v1288
      %v1290 = vrcp.pop %v1241
      %v1291 = vmul.f32 1.0, %v1290
      %v1292 = vrcp.pop %v1242
      %v1293 = vmul.f32 1.0, %v1292
      %v1294 = vrcp.pop %v1243
      %v1295 = vmul.f32 1.0, %v1294
      %v1296 = vrcp.pop %v1244
      %v1297 = vmul.f32 1.0, %v1296
      %v1298 = vrcp.pop %v1245
      %v1299 = vmul.f32 1.0, %v1298
      %v1300 = vrcp.pop %v1246
      %v1301 = vmul.f32 1.0, %v1300
      %v1302 = vrcp.pop %v1247
      %v1303 = vmul.f32 1.0, %v1302
      %v1304 = vrcp.pop %v1248
      %v1305 = vmul.f32 1.0, %v1304
      %v1306 = vrcp.pop %v1249
      %v1307 = vmul.f32 1.0, %v1306
      %v1308 = vrcp.pop %v1250
      %v1309 = vmul.f32 1.0, %v1308
      %v1310 = vrcp.pop %v1251
      %v1311 = vmul.f32 1.0, %v1310
      %v1312 = vrcp.pop %v1252
      %v1313 = vmul.f32 1.0, %v1312
      %v1314 = vrcp.pop %v1253
      %v1315 = vmul.f32 1.0, %v1314
      %v1316 = vrcp.pop %v1254
      %v1317 = vmul.f32 1.0, %v1316
      %v1318 = vrcp.pop %v1255
      %v1319 = vmul.f32 1.0, %v1318
      %v1320 = vmul.f32 %v970, %v1257
      %v1321 = vmul.f32 %v975, %v1259
      %v1322 = vmul.f32 %v980, %v1261
      %v1323 = vmul.f32 %v985, %v1263
      %v1324 = vmul.f32 %v990, %v1265
      %v1325 = vmul.f32 %v995, %v1267
      %v1326 = vmul.f32 %v1000, %v1269
      %v1327 = vmul.f32 %v1005, %v1271
      %v1328 = vmul.f32 %v1010, %v1273
      %v1329 = vmul.f32 %v1015, %v1275
      %v1330 = vmul.f32 %v1020, %v1277
      %v1331 = vmul.f32 %v1025, %v1279
      %v1332 = vmul.f32 %v1030, %v1281
      %v1333 = vmul.f32 %v1035, %v1283
      %v1334 = vmul.f32 %v1040, %v1285
      %v1335 = vmul.f32 %v1045, %v1287
      %v1336 = vmul.f32 %v1050, %v1289
      %v1337 = vmul.f32 %v1055, %v1291
      %v1338 = vmul.f32 %v1060, %v1293
      %v1339 = vmul.f32 %v1065, %v1295
      %v1340 = vmul.f32 %v1070, %v1297
      %v1341 = vmul.f32 %v1075, %v1299
      %v1342 = vmul.f32 %v1080, %v1301
      %v1343 = vmul.f32 %v1085, %v1303
      %v1344 = vmul.f32 %v1090, %v1305
      %v1345 = vmul.f32 %v1095, %v1307
      %v1346 = vmul.f32 %v1100, %v1309
      %v1347 = vmul.f32 %v1105, %v1311
      %v1348 = vmul.f32 %v1110, %v1313
      %v1349 = vmul.f32 %v1115, %v1315
      %v1350 = vmul.f32 %v1120, %v1317
      %v1351 = vmul.f32 %v1125, %v1319
      %1352 = vst.msk [vmem:[%s267] sm:$0xff] %vm859, %v1320
      %1353 = vst.msk [vmem:[%s267 + $0x8] sm:$0xff] %vm859, %v1321
      %1354 = vst.msk [vmem:[%s267 + $0x10] sm:$0xff] %vm859, %v1322
      %1355 = vst.msk [vmem:[%s267 + $0x18] sm:$0xff] %vm859, %v1323
      %1356 = vst.msk [vmem:[%s267 + $0x20] sm:$0xff] %vm859, %v1324
      %1357 = vst.msk [vmem:[%s267 + $0x28] sm:$0xff] %vm859, %v1325
      %1358 = vst.msk [vmem:[%s267 + $0x30] sm:$0xff] %vm859, %v1326
      %1359 = vst.msk [vmem:[%s267 + $0x38] sm:$0xff] %vm859, %v1327
      %1360 = vst.msk [vmem:[%s267 + $0x40] sm:$0xff] %vm859, %v1328
      %1361 = vst.msk [vmem:[%s267 + $0x48] sm:$0xff] %vm859, %v1329
      %1362 = vst.msk [vmem:[%s267 + $0x50] sm:$0xff] %vm859, %v1330
      %1363 = vst.msk [vmem:[%s267 + $0x58] sm:$0xff] %vm859, %v1331
      %1364 = vst.msk [vmem:[%s267 + $0x60] sm:$0xff] %vm859, %v1332
      %1365 = vst.msk [vmem:[%s267 + $0x68] sm:$0xff] %vm859, %v1333
      %1366 = vst.msk [vmem:[%s267 + $0x70] sm:$0xff] %vm859, %v1334
      %1367 = vst.msk [vmem:[%s267 + $0x78] sm:$0xff] %vm859, %v1335
      %1368 = vst.msk [vmem:[%s267 + $0x80] sm:$0xff] %vm859, %v1336
      %1369 = vst.msk [vmem:[%s267 + $0x88] sm:$0xff] %vm859, %v1337
      %1370 = vst.msk [vmem:[%s267 + $0x90] sm:$0xff] %vm859, %v1338
      %1371 = vst.msk [vmem:[%s267 + $0x98] sm:$0xff] %vm859, %v1339
      %1372 = vst.msk [vmem:[%s267 + $0xa0] sm:$0xff] %vm859, %v1340
      %1373 = vst.msk [vmem:[%s267 + $0xa8] sm:$0xff] %vm859, %v1341
      %1374 = vst.msk [vmem:[%s267 + $0xb0] sm:$0xff] %vm859, %v1342
      %1375 = vst.msk [vmem:[%s267 + $0xb8] sm:$0xff] %vm859, %v1343
      %1376 = vst.msk [vmem:[%s267 + $0xc0] sm:$0xff] %vm859, %v1344
      %1377 = vst.msk [vmem:[%s267 + $0xc8] sm:$0xff] %vm859, %v1345
      %1378 = vst.msk [vmem:[%s267 + $0xd0] sm:$0xff] %vm859, %v1346
      %1379 = vst.msk [vmem:[%s267 + $0xd8] sm:$0xff] %vm859, %v1347
      %1380 = vst.msk [vmem:[%s267 + $0xe0] sm:$0xff] %vm859, %v1348
      %1381 = vst.msk [vmem:[%s267 + $0xe8] sm:$0xff] %vm859, %v1349
      %1382 = vst.msk [vmem:[%s267 + $0xf0] sm:$0xff] %vm859, %v1350
      %1383 = vst.msk [vmem:[%s267 + $0xf8] sm:$0xff] %vm859, %v1351
      %s1384 = smul.u32 32, %s18
      %p1385 = scmp.lt.s32.totalorder %s1384, 63
      %s1386 = scalar_select %p1385, %s1384, 63
      %s1387 = smul.addr %s1386, 8
      %s1388 = scalar_lea.vmem %s5, %s1387
      %s1389 = smul.u32 32, %s18
      %p1390 = scmp.lt.s32.totalorder %s1389, 63
      %s1391 = scalar_select %p1390, %s1389, 63
      %s1392 = smul.addr %s1391, 8
      %s1393 = scalar_lea.vmem %s6, %s1392
      // Predicated region
      $region41: #{tpu_custom_call.1} parent=39 // pred_check
        %p1394 = pneg %p146
      $region42: #{tpu_custom_call.1} parent=39 // pred_check_branch
        %1396 = sbr.rel (%p1394) target = $region44
      $region43: #{tpu_custom_call.1} parent=39 // pred_region
        %s1397 = smul.u32 32, %s18
      $region44: #{tpu_custom_call.1} parent=39 // pred_fallthru
        _
      // Predicated region
      $region45: #{tpu_custom_call.1} parent=39 // pred_check
        %p1398 = pneg %p172
      $region46: #{tpu_custom_call.1} parent=39 // pred_check_branch
        %1400 = sbr.rel (%p1398) target = $region48
      $region47: #{tpu_custom_call.1} parent=39 // pred_region
        %s1401 = smul.u32 32, %s18
      $region48: #{tpu_custom_call.1} parent=39 // pred_fallthru
        _
    $region40: #{tpu_custom_call.1} parent=5 // pred_fallthru
      _
    %p1402 = scmp.le.s32.totalorder 2, %s13
    // Predicated region
    $region49: #{tpu_custom_call.1} parent=5 // pred_check
      %p1403 = pneg %p1402
    $region50: #{tpu_custom_call.1} parent=5 // pred_check_branch
      %1405 = sbr.rel (%p1403) target = $region52
    $region51: #{tpu_custom_call.1} parent=5 // pred_region
      %s1406 = ssub.s32 %s13, 2
      // Predicated region
      $region53: #{tpu_custom_call.1} parent=51 // pred_check
        %p1407 = pneg %p152
      $region54: #{tpu_custom_call.1} parent=51 // pred_check_branch
        %1409 = sbr.rel (%p1407) target = $region56
      $region55: #{tpu_custom_call.1} parent=51 // pred_region
        %s1410 = smul.u32 32, %s19
        %p1411 = scmp.lt.s32.totalorder %s1410, 63
        %s1412 = scalar_select %p1411, %s1410, 63
        %s1413 = smul.addr %s1412, 8
        %s1414 = scalar_lea.vmem %s5, %s1413
      $region56: #{tpu_custom_call.1} parent=51 // pred_fallthru
        _
      // Predicated region
      $region57: #{tpu_custom_call.1} parent=51 // pred_check
        %p1415 = pneg %p178
      $region58: #{tpu_custom_call.1} parent=51 // pred_check_branch
        %1417 = sbr.rel (%p1415) target = $region60
      $region59: #{tpu_custom_call.1} parent=51 // pred_region
        %s1418 = smul.u32 32, %s19
        %p1419 = scmp.lt.s32.totalorder %s1418, 63
        %s1420 = scalar_select %p1419, %s1418, 63
        %s1421 = smul.addr %s1420, 8
        %s1422 = scalar_lea.vmem %s6, %s1421
      $region60: #{tpu_custom_call.1} parent=51 // pred_fallthru
        _
    $region52: #{tpu_custom_call.1} parent=5 // pred_fallthru
      _
  $region6: #{tpu_custom_call.1} parent=0 // loop_footer
    %s17 = sadd.s32 1, %s13
  $region7: #{tpu_custom_call.1} parent=0 // loop_footer_branch
    %12 = sbr.rel target = $region3
  $region8: #{tpu_custom_call.1} parent=0 // loop_exit
    _

</llo_original>
